<compile_context>
chip_gen: v5e
topology: v5e:2x2
jax: 0.10.0
libtpu: 0.0.40
codegen_flags: <defaults>
</compile_context>

<pallas_src>
import inspect

import jax
import jax.numpy as jnp
from jax.experimental import pallas as pl
from jax.experimental.pallas import tpu as pltpu


# -----------------------------------------------------------------------------
# Small capability / sizing helpers
# -----------------------------------------------------------------------------
def _supports_single_buffer():
    try:
        return (hasattr(pl, "Buffered")
                and "pipeline_mode" in inspect.signature(pl.BlockSpec).parameters)
    except (TypeError, ValueError):
        return False


_SINGLE_BUFFER_OK = _supports_single_buffer()


def _const_spec(shape):
    """BlockSpec for a grid-invariant operand (same block at every grid step).

    Single-buffered when supported: its index_map is constant, so a second
    pipeline buffer would only waste VMEM that we want for a larger BW.
    """
    index_map = lambda g: (0,) * len(shape)
    if _SINGLE_BUFFER_OK:
        return pl.BlockSpec(shape, index_map,
                            pipeline_mode=pl.Buffered(buffer_count=1))
    return pl.BlockSpec(shape, index_map)


def _rup(v, m):
    return -(-v // m) * m


def _vmem_capacity_bytes():
    try:
        return int(pltpu.get_tpu_info().vmem_capacity_bytes)
    except Exception:
        return 64 << 20          # conservative fallback (v7x per-core VMEM)


def _block_vmem_bytes(bw, N, C, num_heads, nw_eff):
    """Rough per-grid-step working set, accounting for (8,128) tile padding."""
    del num_heads, nw_eff
    Ns, Nl = _rup(N, 8), _rup(N, 128)
    Cl, C3l = _rup(C, 128), _rup(3 * C, 128)
    b = 0
    b += 2 * bw * Ns * Cl * 4          # x block, double-buffered, f32
    b += 2 * bw * Ns * Cl * 4          # out block, double-buffered
    b += bw * N * Cl * 2               # x2d bf16 copy
    b += bw * N * C3l * (4 + 2)        # qkv f32 matmul result + bf16 copy
    b += 2 * bw * Ns * Nl * 4          # attention logits + probs (one head live)
    b += bw * Ns * Cl * (4 + 2)        # concatenated head outputs f32 + bf16
    b += bw * N * Cl * 4               # output-projection result
    return b


def _fixed_vmem_bytes(N, C, num_heads, nw_eff):
    """Grid-invariant operands (single-buffered weights / bias tables)."""
    Ns, Nl = _rup(N, 8), _rup(N, 128)
    Cl, C3l = _rup(C, 128), _rup(3 * C, 128)
    return (C * C3l * 2 + C * Cl * 2           # Wqkv^T, Wproj^T (bf16)
            + C3l * 4 + Cl * 4                 # bqkv, bproj (f32)
            + num_heads * nw_eff * Ns * Nl * 4)  # folded rel-pos (+mask) bias


def _choose_block_windows(B_, N, C, num_heads, nw_eff, budget_bytes):
    """Largest window block that fits the VMEM budget.

    Preference order: >= 4 grid steps (pipeline overlap on single-TC chips and
    >= 2 steps per TensorCore on v7x), then >= 2 steps, then an MXU-friendly
    M = BW*N (multiple of 256 / 128), then the largest BW.
    """
    fixed = _fixed_vmem_bytes(N, C, num_heads, nw_eff)
    cands = [bw for bw in range(nw_eff, B_ + 1, nw_eff)
             if B_ % bw == 0
             and fixed + _block_vmem_bytes(bw, N, C, num_heads, nw_eff)
             <= budget_bytes]
    if not cands:
        cands = [nw_eff]

    def score(bw):
        steps = B_ // bw
        return (steps >= 4, steps >= 2,
                (bw * N) % 256 == 0, (bw * N) % 128 == 0, bw)

    return max(cands, key=score)


# -----------------------------------------------------------------------------
# Kernel factory: one block of BW windows per grid step.
# -----------------------------------------------------------------------------
def _make_window_attn_kernel(num_heads, nw_eff):
    def kernel(x_ref, wqkv_ref, bqkv_ref, bias_ref, wproj_ref, bproj_ref, o_ref):
        BW, N, C = x_ref.shape
        hd = C // num_heads
        G = BW // nw_eff

        # ---- QKV projection on the MXU: (BW*N, C) @ (C, 3C), f32 accumulate.
        x2d = x_ref[...].reshape(BW * N, C).astype(jnp.bfloat16)
        qkv = jnp.dot(x2d, wqkv_ref[...], preferred_element_type=jnp.float32)
        # q scale is pre-folded into Wqkv/bqkv; cast once to bf16 for all the
        # attention matmuls (softmax stays f32).
        qkv = (qkv + bqkv_ref[0]).astype(jnp.bfloat16).reshape(BW, N, 3 * C)

        bias = bias_ref[...]          # (H, nw_eff, N, N) f32 rel-pos bias (+mask)

        head_outs = []
        for h in range(num_heads):    # H is small and static in Swin
            qh = qkv[:, :, h * hd:(h + 1) * hd]
            kh = qkv[:, :, C + h * hd:C + (h + 1) * hd]
            vh = qkv[:, :, 2 * C + h * hd:2 * C + (h + 1) * hd]

            attn = jnp.einsum('bnd,bmd->bnm', qh, kh,
                              preferred_element_type=jnp.float32)   # (BW, N, N)
            # folded (rel-pos + shift-mask) bias: window of local row j is
            # j % nw_eff because BW % nw_eff == 0 and blocks start at multiples
            # of BW.  Leading-dim reshapes only (layout-free).
            attn = (attn.reshape(G, nw_eff, N, N) + bias[h][None]
                    ).reshape(BW, N, N)

            # numerically-stable softmax along keys (f32 on VPU; EUP reciprocal
            # -> tiny deviation from exact softmax, denominator >= 1 so safe)
            attn = attn - jnp.max(attn, axis=-1, keepdims=True)
            p = jnp.exp(attn)
            p = p * pl.reciprocal(jnp.sum(p, axis=-1, keepdims=True), approx=True)

            head_outs.append(
                jnp.einsum('bnm,bmd->bnd', p.astype(jnp.bfloat16), vh,
                           preferred_element_type=jnp.float32))     # (BW, N, hd)

        # ---- single K=C output projection (instead of H small K=hd matmuls)
        heads = jnp.concatenate(head_outs, axis=-1)                 # (BW, N, C)
        out = jnp.dot(heads.reshape(BW * N, C).astype(jnp.bfloat16),
                      wproj_ref[...], preferred_element_type=jnp.float32)
        out = out + bproj_ref[0]
        o_ref[...] = out.reshape(BW, N, C).astype(o_ref.dtype)

    return kernel


# -----------------------------------------------------------------------------
# Wrapper
# -----------------------------------------------------------------------------
def window_attention_pallas(x, wqkv_t, bqkv, rel_bias, mask, wproj_t, bproj,
                            *, num_heads, scale):
    """x: (B_, N, C); mask: (nW, N, N) or None; rel_bias: (num_heads, N, N)."""
    B_, N, C = x.shape
    has_mask = mask is not None
    if has_mask:
        nW = mask.shape[0]
        assert B_ % nW == 0, "num_windows*B must be a multiple of nW (torch view)"

    # Fold the q scale into the q columns of the qkv projection (cols [:C]).
    # Note: folding before the bf16 cast rounds the scaled weights slightly
    # differently than PyTorch's f32 q*scale -> loose tolerance vs f32 ref.
    wqkv_s = wqkv_t.at[:, :C].multiply(scale)
    bqkv_s = bqkv.at[:C].multiply(scale)
    wqkv_bf = wqkv_s.astype(jnp.bfloat16)        # bf16 at the MXU boundary
    wproj_bf = wproj_t.astype(jnp.bfloat16)
    bqkv2 = bqkv_s.reshape(1, 3 * C).astype(jnp.float32)
    bproj2 = bproj.reshape(1, C).astype(jnp.float32)

    # Fold the (0/-100) shift mask into the relative-position bias on the host:
    # folded[h, w] = rel_bias[h] + mask[w]  -> one add per head in the kernel,
    # no BW-tiled mask in HBM/VMEM.  mask=None just uses nW_eff = 1.
    rb = rel_bias.astype(jnp.float32)
    if has_mask:
        folded_bias = rb[:, None, :, :] + mask.astype(jnp.float32)[None, :, :, :]
    else:
        folded_bias = rb[:, None, :, :]
    nw_eff = folded_bias.shape[1]

    # VMEM-aware block sizing + matching scoped-VMEM limit for the compiler.
    vmem_cap = _vmem_capacity_bytes()            # 128 MiB v5e/v6e, 64 MiB v7x
    BW = _choose_block_windows(B_, N, C, num_heads, nw_eff, vmem_cap // 2)
    vmem_limit = int(vmem_cap * 3 // 4)
    grid = (B_ // BW,)

    in_specs = [
        pl.BlockSpec((BW, N, C), lambda g: (g, 0, 0)),   # x block (pipelined)
        _const_spec((C, 3 * C)),                         # Wqkv^T (bf16, q-scaled)
        _const_spec((1, 3 * C)),                         # bqkv (q-scaled)
        _const_spec((num_heads, nw_eff, N, N)),          # rel-pos bias (+ mask)
        _const_spec((C, C)),                             # Wproj^T (bf16)
        _const_spec((1, C)),                             # bproj
    ]
    args = [x, wqkv_bf, bqkv2, folded_bias, wproj_bf, bproj2]

    kernel = _make_window_attn_kernel(num_heads, nw_eff)

    return pl.pallas_call(
        kernel,
        out_shape=jax.ShapeDtypeStruct((B_, N, C), x.dtype),   # PyTorch: x.dtype
        grid_spec=pltpu.PrefetchScalarGridSpec(
            num_scalar_prefetch=0,
            grid=grid,
            in_specs=in_specs,
            out_specs=pl.BlockSpec((BW, N, C), lambda g: (g, 0, 0)),
        ),
        compiler_params=pltpu.CompilerParams(
            dimension_semantics=("parallel",),
            vmem_limit_bytes=vmem_limit,
        ),
    )(*args)


# -----------------------------------------------------------------------------
# Pure-JAX f32 reference (mirrors the PyTorch forward exactly)
# -----------------------------------------------------------------------------
def window_attention_ref(x, wqkv_t, bqkv, rel_bias, mask, wproj_t, bproj,
                         *, num_heads, scale):
    B_, N, C = x.shape
    hd = C // num_heads
    qkv = (x @ wqkv_t + bqkv).reshape(B_, N, 3, num_heads, hd)
    qkv = jnp.transpose(qkv, (2, 0, 3, 1, 4))                 # (3, B_, H, N, hd)
    q, k, v = qkv[0], qkv[1], qkv[2]
    q = q * scale
    attn = jnp.einsum('bhnd,bhmd->bhnm', q, k)                # (B_, H, N, N)
    attn = attn + rel_bias[None]
    if mask is not None:
        nW = mask.shape[0]
        attn = attn.reshape(B_ // nW, nW, num_heads, N, N) + mask[None, :, None]
        attn = attn.reshape(B_, num_heads, N, N)
    attn = jax.nn.softmax(attn, axis=-1)
    out = jnp.einsum('bhnm,bhmd->bhnd', attn, v)
    out = jnp.transpose(out, (0, 2, 1, 3)).reshape(B_, N, C)
    return out @ wproj_t + bproj


# -----------------------------------------------------------------------------
# Relative position index (same recipe as the PyTorch __init__)
# -----------------------------------------------------------------------------
def make_relative_position_index(window_size):
    Wh, Ww = window_size
    coords = jnp.stack(jnp.meshgrid(jnp.arange(Wh), jnp.arange(Ww), indexing='ij'))
    coords_flatten = coords.reshape(2, -1)                               # (2, N)
    rel = coords_flatten[:, :, None] - coords_flatten[:, None, :]        # (2, N, N)
    rel = jnp.transpose(rel, (1, 2, 0))                                  # (N, N, 2)
    rel = rel.at[:, :, 0].add(Wh - 1)
    rel = rel.at[:, :, 1].add(Ww - 1)
    rel = rel.at[:, :, 0].multiply(2 * Ww - 1)
    return rel.sum(-1)                                                   # (N, N)


if __name__ == "__main__":
    # ---- small, module-consistent configuration ----
    dim = 32
    window_size = (4, 4)
    num_heads = 4
    head_dim = dim // num_heads
    scale = head_dim ** (-0.5)
    N = window_size[0] * window_size[1]        # 16 tokens per window
    B = 4                                      # batch
    nW = 4                                     # number of windows
    B_ = B * nW                                # 16

    key = jax.random.PRNGKey(0)
    k_x, k_qw, k_qb, k_pw, k_pb, k_tab = jax.random.split(key, 6)

    # deterministic synthetic parameters (torch Linear weight is (out,in);
    # we store them pre-transposed as (in,out))
    wqkv_t = 0.1 * jax.random.normal(k_qw, (dim, 3 * dim), jnp.float32)
    bqkv = 0.1 * jax.random.normal(k_qb, (3 * dim,), jnp.float32)
    wproj_t = 0.1 * jax.random.normal(k_pw, (dim, dim), jnp.float32)
    bproj = 0.1 * jax.random.normal(k_pb, (dim,), jnp.float32)
    # TODO(synk): plain normal used instead of truncated normal (synthetic init)
    rpb_table = 0.1 * jax.random.normal(
        k_tab, ((2 * window_size[0] - 1) * (2 * window_size[1] - 1), num_heads),
        jnp.float32)

    rel_index = make_relative_position_index(window_size)               # (N, N)
    rel_bias = rpb_table[rel_index.reshape(-1)].reshape(N, N, num_heads)
    rel_bias = jnp.transpose(rel_bias, (2, 0, 1)).astype(jnp.float32)   # (H, N, N)

    # input features (num_windows*B, N, C)
    x = jax.random.normal(k_x, (B_, N, dim), jnp.float32)

    # 0 / -100 shift masks, (nW, N, N); every row keeps finite entries
    tok = jnp.arange(N)
    masks = [jnp.zeros((N, N), jnp.float32)]
    for g in (2, 4, 8):
        masks.append(jnp.where((tok[:, None] // g) == (tok[None, :] // g),
                               0.0, -100.0).astype(jnp.float32))
    mask = jnp.stack(masks[:nW], axis=0)                                 # (nW, N, N)

    # ---- masked variant ----
    out = window_attention_pallas(x, wqkv_t, bqkv, rel_bias, mask,
                                  wproj_t, bproj,
                                  num_heads=num_heads, scale=scale)
    out = jax.block_until_ready(out)
    ref = window_attention_ref(x, wqkv_t, bqkv, rel_bias, mask,
                               wproj_t, bproj,
                               num_heads=num_heads, scale=scale)
    assert out.shape == (B_, N, dim)
    # bf16 matmul operands with f32 accumulation -> loose tolerance vs f32 ref
    assert jnp.allclose(out, ref, atol=2e-2, rtol=5e-2), "mismatch (masked)"

    # ---- mask=None variant (no mask operand at all; nW_eff collapses to 1) ----
    out_nm = window_attention_pallas(x, wqkv_t, bqkv, rel_bias, None,
                                     wproj_t, bproj,
                                     num_heads=num_heads, scale=scale)
    out_nm = jax.block_until_ready(out_nm)
    ref_nm = window_attention_ref(x, wqkv_t, bqkv, rel_bias, None,
                                  wproj_t, bproj,
                                  num_heads=num_heads, scale=scale)
    assert jnp.allclose(out_nm, ref_nm, atol=2e-2, rtol=5e-2), "mismatch (no mask)"

    print("KERNEL_OK")
</pallas_src>

<mosaic_0001>
module attributes {stable_mosaic.version = 11 : i64} {
  func.func @kernel(%arg0: i32, %arg1: memref<4x16x32xf32, #tpu.memory_space<vmem>>, %arg2: memref<32x96xbf16, #tpu.memory_space<vmem>>, %arg3: memref<1x96xf32, #tpu.memory_space<vmem>>, %arg4: memref<4x4x16x16xf32, #tpu.memory_space<vmem>>, %arg5: memref<32x32xbf16, #tpu.memory_space<vmem>>, %arg6: memref<1x32xf32, #tpu.memory_space<vmem>>, %arg7: memref<4x16x32xf32, #tpu.memory_space<vmem>>) attributes {dimension_semantics = [#tpu.dimension_semantics<parallel>], iteration_bounds = array<i64: 4>, scalar_prefetch = 0 : i64, scratch_operands = 0 : i64, tpu.core_type = #tpu.core_type<tc>, window_params = [{transform_indices = @transform_0, window_bounds = array<i64: 4, 16, 32>}, {pipeline_mode = #tpu.pipeline_mode<synchronous>, transform_indices = @transform_1, window_bounds = array<i64: 32, 96>}, {pipeline_mode = #tpu.pipeline_mode<synchronous>, transform_indices = @transform_2, window_bounds = array<i64: 1, 96>}, {pipeline_mode = #tpu.pipeline_mode<synchronous>, transform_indices = @transform_3, window_bounds = array<i64: 4, 4, 16, 16>}, {pipeline_mode = #tpu.pipeline_mode<synchronous>, transform_indices = @transform_4, window_bounds = array<i64: 32, 32>}, {pipeline_mode = #tpu.pipeline_mode<synchronous>, transform_indices = @transform_5, window_bounds = array<i64: 1, 32>}, {transform_indices = @transform_6, window_bounds = array<i64: 4, 16, 32>}]} {
    %c0 = arith.constant 0 : index
    %c0_0 = arith.constant 0 : index
    %c0_1 = arith.constant 0 : index
    %0 = vector.load %arg1[%c0, %c0_0, %c0_1] : memref<4x16x32xf32, #tpu.memory_space<vmem>>, vector<4x16x32xf32>
    %1 = vector.shape_cast %0 : vector<4x16x32xf32> to vector<64x32xf32>
    %2 = arith.truncf %1 : vector<64x32xf32> to vector<64x32xbf16>
    %c0_2 = arith.constant 0 : index
    %c0_3 = arith.constant 0 : index
    %3 = vector.load %arg2[%c0_2, %c0_3] : memref<32x96xbf16, #tpu.memory_space<vmem>>, vector<32x96xbf16>
    %cst = arith.constant dense<0.000000e+00> : vector<64x96xf32>
    %4 = tpu.matmul %2, %3, %cst {dimension_numbers = #tpu.dot_dimension_numbers<[1], [0], [0], [1], [0, 0, 1, 1], [], []>} : vector<64x32xbf16>, vector<32x96xbf16>, vector<64x96xf32> -> vector<64x96xf32>
    %c0_4 = arith.constant 0 : index
    %c0_5 = arith.constant 0 : index
    %5 = vector.load %arg3[%c0_4, %c0_5] : memref<1x96xf32, #tpu.memory_space<vmem>>, vector<1x96xf32>
    %6 = vector.shape_cast %5 : vector<1x96xf32> to vector<96xf32>
    %7 = vector.shape_cast %6 : vector<96xf32> to vector<1x96xf32>
    %8 = vector.broadcast %7 : vector<1x96xf32> to vector<64x96xf32>
    %9 = arith.addf %4, %8 : vector<64x96xf32>
    %10 = arith.truncf %9 : vector<64x96xf32> to vector<64x96xbf16>
    %11 = vector.shape_cast %10 : vector<64x96xbf16> to vector<4x16x96xbf16>
    %c0_6 = arith.constant 0 : index
    %c0_7 = arith.constant 0 : index
    %c0_8 = arith.constant 0 : index
    %c0_9 = arith.constant 0 : index
    %12 = vector.load %arg4[%c0_6, %c0_7, %c0_8, %c0_9] : memref<4x4x16x16xf32, #tpu.memory_space<vmem>>, vector<4x4x16x16xf32>
    %13 = vector.extract_strided_slice %11 {offsets = [0, 0, 0], sizes = [4, 16, 8], strides = [1, 1, 1]} : vector<4x16x96xbf16> to vector<4x16x8xbf16>
    %14 = vector.extract_strided_slice %11 {offsets = [0, 0, 32], sizes = [4, 16, 8], strides = [1, 1, 1]} : vector<4x16x96xbf16> to vector<4x16x8xbf16>
    %15 = vector.extract_strided_slice %11 {offsets = [0, 0, 64], sizes = [4, 16, 8], strides = [1, 1, 1]} : vector<4x16x96xbf16> to vector<4x16x8xbf16>
    "tpu.trace_start"() <{level = 10 : i32, message = "bnd,bmd->bnm"}> : () -> ()
    %cst_10 = arith.constant dense<0.000000e+00> : vector<4x16x16xf32>
    %16 = tpu.matmul %13, %14, %cst_10 {dimension_numbers = #tpu.dot_dimension_numbers<[2], [2], [1], [1], [0, 0, 0, 1, 1, 1], [0], [0]>} : vector<4x16x8xbf16>, vector<4x16x8xbf16>, vector<4x16x16xf32> -> vector<4x16x16xf32>
    "tpu.trace_stop"() : () -> ()
    %17 = vector.shape_cast %16 : vector<4x16x16xf32> to vector<1x4x16x16xf32>
    %18 = vector.extract_strided_slice %12 {offsets = [0, 0, 0, 0], sizes = [1, 4, 16, 16], strides = [1, 1, 1, 1]} : vector<4x4x16x16xf32> to vector<1x4x16x16xf32>
    %19 = vector.shape_cast %18 : vector<1x4x16x16xf32> to vector<4x16x16xf32>
    %20 = vector.shape_cast %19 : vector<4x16x16xf32> to vector<1x4x16x16xf32>
    %21 = arith.addf %17, %20 : vector<1x4x16x16xf32>
    %22 = vector.shape_cast %21 : vector<1x4x16x16xf32> to vector<4x16x16xf32>
    %cst_11 = arith.constant dense<0xFF800000> : vector<4x16xf32>
    %23 = vector.multi_reduction <maximumf>, %22, %cst_11 [2] : vector<4x16x16xf32> to vector<4x16xf32>
    %24 = vector.shape_cast %23 : vector<4x16xf32> to vector<4x16x1xf32>
    %25 = vector.broadcast %24 : vector<4x16x1xf32> to vector<4x16x16xf32>
    %26 = arith.subf %22, %25 : vector<4x16x16xf32>
    %27 = math.exp %26 : vector<4x16x16xf32>
    %cst_12 = arith.constant dense<0.000000e+00> : vector<4x16xf32>
    %28 = vector.multi_reduction <add>, %27, %cst_12 [2] : vector<4x16x16xf32> to vector<4x16xf32>
    %29 = vector.shape_cast %28 : vector<4x16xf32> to vector<4x16x1xf32>
    %30 = tpu.reciprocal %29 {approx = true} : vector<4x16x1xf32> -> vector<4x16x1xf32>
    %31 = vector.broadcast %30 : vector<4x16x1xf32> to vector<4x16x16xf32>
    %32 = arith.mulf %27, %31 : vector<4x16x16xf32>
    %33 = arith.truncf %32 : vector<4x16x16xf32> to vector<4x16x16xbf16>
    "tpu.trace_start"() <{level = 10 : i32, message = "bnm,bmd->bnd"}> : () -> ()
    %cst_13 = arith.constant dense<0.000000e+00> : vector<4x16x8xf32>
    %34 = tpu.matmul %33, %15, %cst_13 {dimension_numbers = #tpu.dot_dimension_numbers<[2], [1], [1], [2], [0, 0, 0, 1, 1, 2], [0], [0]>} : vector<4x16x16xbf16>, vector<4x16x8xbf16>, vector<4x16x8xf32> -> vector<4x16x8xf32>
    "tpu.trace_stop"() : () -> ()
    %35 = vector.extract_strided_slice %11 {offsets = [0, 0, 8], sizes = [4, 16, 8], strides = [1, 1, 1]} : vector<4x16x96xbf16> to vector<4x16x8xbf16>
    %36 = vector.extract_strided_slice %11 {offsets = [0, 0, 40], sizes = [4, 16, 8], strides = [1, 1, 1]} : vector<4x16x96xbf16> to vector<4x16x8xbf16>
    %37 = vector.extract_strided_slice %11 {offsets = [0, 0, 72], sizes = [4, 16, 8], strides = [1, 1, 1]} : vector<4x16x96xbf16> to vector<4x16x8xbf16>
    "tpu.trace_start"() <{level = 10 : i32, message = "bnd,bmd->bnm"}> : () -> ()
    %cst_14 = arith.constant dense<0.000000e+00> : vector<4x16x16xf32>
    %38 = tpu.matmul %35, %36, %cst_14 {dimension_numbers = #tpu.dot_dimension_numbers<[2], [2], [1], [1], [0, 0, 0, 1, 1, 1], [0], [0]>} : vector<4x16x8xbf16>, vector<4x16x8xbf16>, vector<4x16x16xf32> -> vector<4x16x16xf32>
    "tpu.trace_stop"() : () -> ()
    %39 = vector.shape_cast %38 : vector<4x16x16xf32> to vector<1x4x16x16xf32>
    %40 = vector.extract_strided_slice %12 {offsets = [1, 0, 0, 0], sizes = [1, 4, 16, 16], strides = [1, 1, 1, 1]} : vector<4x4x16x16xf32> to vector<1x4x16x16xf32>
    %41 = vector.shape_cast %40 : vector<1x4x16x16xf32> to vector<4x16x16xf32>
    %42 = vector.shape_cast %41 : vector<4x16x16xf32> to vector<1x4x16x16xf32>
    %43 = arith.addf %39, %42 : vector<1x4x16x16xf32>
    %44 = vector.shape_cast %43 : vector<1x4x16x16xf32> to vector<4x16x16xf32>
    %cst_15 = arith.constant dense<0xFF800000> : vector<4x16xf32>
    %45 = vector.multi_reduction <maximumf>, %44, %cst_15 [2] : vector<4x16x16xf32> to vector<4x16xf32>
    %46 = vector.shape_cast %45 : vector<4x16xf32> to vector<4x16x1xf32>
    %47 = vector.broadcast %46 : vector<4x16x1xf32> to vector<4x16x16xf32>
    %48 = arith.subf %44, %47 : vector<4x16x16xf32>
    %49 = math.exp %48 : vector<4x16x16xf32>
    %cst_16 = arith.constant dense<0.000000e+00> : vector<4x16xf32>
    %50 = vector.multi_reduction <add>, %49, %cst_16 [2] : vector<4x16x16xf32> to vector<4x16xf32>
    %51 = vector.shape_cast %50 : vector<4x16xf32> to vector<4x16x1xf32>
    %52 = tpu.reciprocal %51 {approx = true} : vector<4x16x1xf32> -> vector<4x16x1xf32>
    %53 = vector.broadcast %52 : vector<4x16x1xf32> to vector<4x16x16xf32>
    %54 = arith.mulf %49, %53 : vector<4x16x16xf32>
    %55 = arith.truncf %54 : vector<4x16x16xf32> to vector<4x16x16xbf16>
    "tpu.trace_start"() <{level = 10 : i32, message = "bnm,bmd->bnd"}> : () -> ()
    %cst_17 = arith.constant dense<0.000000e+00> : vector<4x16x8xf32>
    %56 = tpu.matmul %55, %37, %cst_17 {dimension_numbers = #tpu.dot_dimension_numbers<[2], [1], [1], [2], [0, 0, 0, 1, 1, 2], [0], [0]>} : vector<4x16x16xbf16>, vector<4x16x8xbf16>, vector<4x16x8xf32> -> vector<4x16x8xf32>
    "tpu.trace_stop"() : () -> ()
    %57 = vector.extract_strided_slice %11 {offsets = [0, 0, 16], sizes = [4, 16, 8], strides = [1, 1, 1]} : vector<4x16x96xbf16> to vector<4x16x8xbf16>
    %58 = vector.extract_strided_slice %11 {offsets = [0, 0, 48], sizes = [4, 16, 8], strides = [1, 1, 1]} : vector<4x16x96xbf16> to vector<4x16x8xbf16>
    %59 = vector.extract_strided_slice %11 {offsets = [0, 0, 80], sizes = [4, 16, 8], strides = [1, 1, 1]} : vector<4x16x96xbf16> to vector<4x16x8xbf16>
    "tpu.trace_start"() <{level = 10 : i32, message = "bnd,bmd->bnm"}> : () -> ()
    %cst_18 = arith.constant dense<0.000000e+00> : vector<4x16x16xf32>
    %60 = tpu.matmul %57, %58, %cst_18 {dimension_numbers = #tpu.dot_dimension_numbers<[2], [2], [1], [1], [0, 0, 0, 1, 1, 1], [0], [0]>} : vector<4x16x8xbf16>, vector<4x16x8xbf16>, vector<4x16x16xf32> -> vector<4x16x16xf32>
    "tpu.trace_stop"() : () -> ()
    %61 = vector.shape_cast %60 : vector<4x16x16xf32> to vector<1x4x16x16xf32>
    %62 = vector.extract_strided_slice %12 {offsets = [2, 0, 0, 0], sizes = [1, 4, 16, 16], strides = [1, 1, 1, 1]} : vector<4x4x16x16xf32> to vector<1x4x16x16xf32>
    %63 = vector.shape_cast %62 : vector<1x4x16x16xf32> to vector<4x16x16xf32>
    %64 = vector.shape_cast %63 : vector<4x16x16xf32> to vector<1x4x16x16xf32>
    %65 = arith.addf %61, %64 : vector<1x4x16x16xf32>
    %66 = vector.shape_cast %65 : vector<1x4x16x16xf32> to vector<4x16x16xf32>
    %cst_19 = arith.constant dense<0xFF800000> : vector<4x16xf32>
    %67 = vector.multi_reduction <maximumf>, %66, %cst_19 [2] : vector<4x16x16xf32> to vector<4x16xf32>
    %68 = vector.shape_cast %67 : vector<4x16xf32> to vector<4x16x1xf32>
    %69 = vector.broadcast %68 : vector<4x16x1xf32> to vector<4x16x16xf32>
    %70 = arith.subf %66, %69 : vector<4x16x16xf32>
    %71 = math.exp %70 : vector<4x16x16xf32>
    %cst_20 = arith.constant dense<0.000000e+00> : vector<4x16xf32>
    %72 = vector.multi_reduction <add>, %71, %cst_20 [2] : vector<4x16x16xf32> to vector<4x16xf32>
    %73 = vector.shape_cast %72 : vector<4x16xf32> to vector<4x16x1xf32>
    %74 = tpu.reciprocal %73 {approx = true} : vector<4x16x1xf32> -> vector<4x16x1xf32>
    %75 = vector.broadcast %74 : vector<4x16x1xf32> to vector<4x16x16xf32>
    %76 = arith.mulf %71, %75 : vector<4x16x16xf32>
    %77 = arith.truncf %76 : vector<4x16x16xf32> to vector<4x16x16xbf16>
    "tpu.trace_start"() <{level = 10 : i32, message = "bnm,bmd->bnd"}> : () -> ()
    %cst_21 = arith.constant dense<0.000000e+00> : vector<4x16x8xf32>
    %78 = tpu.matmul %77, %59, %cst_21 {dimension_numbers = #tpu.dot_dimension_numbers<[2], [1], [1], [2], [0, 0, 0, 1, 1, 2], [0], [0]>} : vector<4x16x16xbf16>, vector<4x16x8xbf16>, vector<4x16x8xf32> -> vector<4x16x8xf32>
    "tpu.trace_stop"() : () -> ()
    %79 = vector.extract_strided_slice %11 {offsets = [0, 0, 24], sizes = [4, 16, 8], strides = [1, 1, 1]} : vector<4x16x96xbf16> to vector<4x16x8xbf16>
    %80 = vector.extract_strided_slice %11 {offsets = [0, 0, 56], sizes = [4, 16, 8], strides = [1, 1, 1]} : vector<4x16x96xbf16> to vector<4x16x8xbf16>
    %81 = vector.extract_strided_slice %11 {offsets = [0, 0, 88], sizes = [4, 16, 8], strides = [1, 1, 1]} : vector<4x16x96xbf16> to vector<4x16x8xbf16>
    "tpu.trace_start"() <{level = 10 : i32, message = "bnd,bmd->bnm"}> : () -> ()
    %cst_22 = arith.constant dense<0.000000e+00> : vector<4x16x16xf32>
    %82 = tpu.matmul %79, %80, %cst_22 {dimension_numbers = #tpu.dot_dimension_numbers<[2], [2], [1], [1], [0, 0, 0, 1, 1, 1], [0], [0]>} : vector<4x16x8xbf16>, vector<4x16x8xbf16>, vector<4x16x16xf32> -> vector<4x16x16xf32>
    "tpu.trace_stop"() : () -> ()
    %83 = vector.shape_cast %82 : vector<4x16x16xf32> to vector<1x4x16x16xf32>
    %84 = vector.extract_strided_slice %12 {offsets = [3, 0, 0, 0], sizes = [1, 4, 16, 16], strides = [1, 1, 1, 1]} : vector<4x4x16x16xf32> to vector<1x4x16x16xf32>
    %85 = vector.shape_cast %84 : vector<1x4x16x16xf32> to vector<4x16x16xf32>
    %86 = vector.shape_cast %85 : vector<4x16x16xf32> to vector<1x4x16x16xf32>
    %87 = arith.addf %83, %86 : vector<1x4x16x16xf32>
    %88 = vector.shape_cast %87 : vector<1x4x16x16xf32> to vector<4x16x16xf32>
    %cst_23 = arith.constant dense<0xFF800000> : vector<4x16xf32>
    %89 = vector.multi_reduction <maximumf>, %88, %cst_23 [2] : vector<4x16x16xf32> to vector<4x16xf32>
    %90 = vector.shape_cast %89 : vector<4x16xf32> to vector<4x16x1xf32>
    %91 = vector.broadcast %90 : vector<4x16x1xf32> to vector<4x16x16xf32>
    %92 = arith.subf %88, %91 : vector<4x16x16xf32>
    %93 = math.exp %92 : vector<4x16x16xf32>
    %cst_24 = arith.constant dense<0.000000e+00> : vector<4x16xf32>
    %94 = vector.multi_reduction <add>, %93, %cst_24 [2] : vector<4x16x16xf32> to vector<4x16xf32>
    %95 = vector.shape_cast %94 : vector<4x16xf32> to vector<4x16x1xf32>
    %96 = tpu.reciprocal %95 {approx = true} : vector<4x16x1xf32> -> vector<4x16x1xf32>
    %97 = vector.broadcast %96 : vector<4x16x1xf32> to vector<4x16x16xf32>
    %98 = arith.mulf %93, %97 : vector<4x16x16xf32>
    %99 = arith.truncf %98 : vector<4x16x16xf32> to vector<4x16x16xbf16>
    "tpu.trace_start"() <{level = 10 : i32, message = "bnm,bmd->bnd"}> : () -> ()
    %cst_25 = arith.constant dense<0.000000e+00> : vector<4x16x8xf32>
    %100 = tpu.matmul %99, %81, %cst_25 {dimension_numbers = #tpu.dot_dimension_numbers<[2], [1], [1], [2], [0, 0, 0, 1, 1, 2], [0], [0]>} : vector<4x16x16xbf16>, vector<4x16x8xbf16>, vector<4x16x8xf32> -> vector<4x16x8xf32>
    "tpu.trace_stop"() : () -> ()
    %101 = tpu.concatenate %34, %56, %78, %100 in 2 : vector<4x16x8xf32>, vector<4x16x8xf32>, vector<4x16x8xf32>, vector<4x16x8xf32> -> vector<4x16x32xf32>
    %102 = vector.shape_cast %101 : vector<4x16x32xf32> to vector<64x32xf32>
    %103 = arith.truncf %102 : vector<64x32xf32> to vector<64x32xbf16>
    %c0_26 = arith.constant 0 : index
    %c0_27 = arith.constant 0 : index
    %104 = vector.load %arg5[%c0_26, %c0_27] : memref<32x32xbf16, #tpu.memory_space<vmem>>, vector<32x32xbf16>
    %cst_28 = arith.constant dense<0.000000e+00> : vector<64x32xf32>
    %105 = tpu.matmul %103, %104, %cst_28 {dimension_numbers = #tpu.dot_dimension_numbers<[1], [0], [0], [1], [0, 0, 1, 1], [], []>} : vector<64x32xbf16>, vector<32x32xbf16>, vector<64x32xf32> -> vector<64x32xf32>
    %c0_29 = arith.constant 0 : index
    %c0_30 = arith.constant 0 : index
    %106 = vector.load %arg6[%c0_29, %c0_30] : memref<1x32xf32, #tpu.memory_space<vmem>>, vector<1x32xf32>
    %107 = vector.shape_cast %106 : vector<1x32xf32> to vector<32xf32>
    %108 = vector.shape_cast %107 : vector<32xf32> to vector<1x32xf32>
    %109 = vector.broadcast %108 : vector<1x32xf32> to vector<64x32xf32>
    %110 = arith.addf %105, %109 : vector<64x32xf32>
    %111 = vector.shape_cast %110 : vector<64x32xf32> to vector<4x16x32xf32>
    %c0_31 = arith.constant 0 : index
    %c0_32 = arith.constant 0 : index
    %c0_33 = arith.constant 0 : index
    %112 = vector.load %arg7[%c0_31, %c0_32, %c0_33] : memref<4x16x32xf32, #tpu.memory_space<vmem>>, vector<4x16x32xf32>
    tpu.vector_store %arg7[%c0_31, %c0_32, %c0_33], %111 {strides = array<i32>} : memref<4x16x32xf32, #tpu.memory_space<vmem>>, vector<4x16x32xf32>,
    return
  }
  func.func @transform_0(%arg0: i32) -> (i32, i32, i32) {
    %c0_i32 = arith.constant 0 : i32
    %c0_i32_0 = arith.constant 0 : i32
    %c0_i32_1 = arith.constant 0 : i32
    return %arg0, %c0_i32, %c0_i32_0 : i32, i32, i32
  }
  func.func @transform_1(%arg0: i32) -> (i32, i32) {
    %c0_i32 = arith.constant 0 : i32
    %c0_i32_0 = arith.constant 0 : i32
    %c0_i32_1 = arith.constant 0 : i32
    return %c0_i32, %c0_i32_0 : i32, i32
  }
  func.func @transform_2(%arg0: i32) -> (i32, i32) {
    %c0_i32 = arith.constant 0 : i32
    %c0_i32_0 = arith.constant 0 : i32
    %c0_i32_1 = arith.constant 0 : i32
    return %c0_i32, %c0_i32_0 : i32, i32
  }
  func.func @transform_3(%arg0: i32) -> (i32, i32, i32, i32) {
    %c0_i32 = arith.constant 0 : i32
    %c0_i32_0 = arith.constant 0 : i32
    %c0_i32_1 = arith.constant 0 : i32
    %c0_i32_2 = arith.constant 0 : i32
    %c0_i32_3 = arith.constant 0 : i32
    return %c0_i32, %c0_i32_0, %c0_i32_1, %c0_i32_2 : i32, i32, i32, i32
  }
  func.func @transform_4(%arg0: i32) -> (i32, i32) {
    %c0_i32 = arith.constant 0 : i32
    %c0_i32_0 = arith.constant 0 : i32
    %c0_i32_1 = arith.constant 0 : i32
    return %c0_i32, %c0_i32_0 : i32, i32
  }
  func.func @transform_5(%arg0: i32) -> (i32, i32) {
    %c0_i32 = arith.constant 0 : i32
    %c0_i32_0 = arith.constant 0 : i32
    %c0_i32_1 = arith.constant 0 : i32
    return %c0_i32, %c0_i32_0 : i32, i32
  }
  func.func @transform_6(%arg0: i32) -> (i32, i32, i32) {
    %c0_i32 = arith.constant 0 : i32
    %c0_i32_0 = arith.constant 0 : i32
    %c0_i32_1 = arith.constant 0 : i32
    return %arg0, %c0_i32, %c0_i32_0 : i32, i32, i32
  }
}

</mosaic_0001>

<llo_original>
// kernel: tpu_custom_call.1
$region0: #{tpu_custom_call.1}
  #allocation0 [shape = 'u32[]', space=smem, size = 0x4, offset = 0x4, fixed_abs, tag = 'smem constant byte address 0x4 - core index']
  #allocation1 [shape = 'u32[72,128]{1,0:T(1,128)}', space=vmem, size = 0x9000, scoped, tag = 'internal scratch']
  %s0 = inlined_call_operand.hbm [shape: f32[16,16,32], index: 0, kind: input, shape index: {}]
  %s1 = inlined_call_operand.hbm [shape: bf16[32,96], index: 1, kind: input, shape index: {}]
  %s2 = inlined_call_operand.vmem [shape: f32[1,96], index: 2, kind: input, shape index: {}]
  %s3 = inlined_call_operand.hbm [shape: f32[4,4,16,16], index: 3, kind: input, shape index: {}]
  %s4 = inlined_call_operand.hbm [shape: bf16[32,32], index: 4, kind: input, shape index: {}]
  %s5 = inlined_call_operand.vmem [shape: f32[1,32], index: 5, kind: input, shape index: {}]
  %s6 = inlined_call_operand.hbm [shape: f32[16,16,32], index: 6, kind: output, shape index: {}]
  %s7 = sld [smem:[#allocation0]]
  $region73: #{tpu_custom_call.1} parent=0
    _
  %s9 = ssub.s32 1, %s7
  %s10 = scalar_select 0, %s9, %s7
  $region1: #{tpu_custom_call.1} parent=0
    #allocation2 [shape = 'u8[65536]{0}', space=vmem, size = 0x10000, scoped, tag = 'input window, operand 0']
    #allocation3 [shape = 's32[2]{0}', space=sflag, size = 0x8, scoped, tag = 'scoped memory for tpu_custom_call.1']
    #allocation4 [shape = 's32[2]{0}', space=sflag, size = 0x8, scoped, tag = 'scoped memory for tpu_custom_call.1']
    #allocation5 [shape = 'u8[8192]{0}', space=vmem, size = 0x2000, scoped, tag = 'input window, operand 1, single buffered']
    #allocation6 [shape = 's32[1]{0}', space=sflag, size = 0x4, scoped, tag = 'scoped memory for tpu_custom_call.1']
    #allocation7 [shape = 'u8[131072]{0}', space=vmem, size = 0x20000, scoped, tag = 'input window, operand 3, single buffered']
    #allocation8 [shape = 'u8[8192]{0}', space=vmem, size = 0x2000, scoped, tag = 'input window, operand 4, single buffered']
    #allocation9 [shape = 's32[1]{0}', space=sflag, size = 0x4, scoped, tag = 'scoped memory for tpu_custom_call.1']
    #allocation10 [shape = 'u8[65536]{0}', space=vmem, size = 0x10000, scoped, tag = 'output window, operand 0']
    %11 = vsyncpa [#allocation3], 0
    %s12 = scalar_lea.sflag [#allocation3], 1
    %13 = vsyncpa %s12, 0
    %14 = vsyncpa [#allocation6], 0
    %15 = vsyncpa [#allocation9], 0
    %16 = vsyncpa [#allocation4], 0
    %s17 = scalar_lea.sflag [#allocation4], 1
    %18 = vsyncpa %s17, 0
    loop: start=0, step=1, limit=6
    $region2: #{tpu_custom_call.1} parent=1 // loop_pre_header
      _
    $region3: #{tpu_custom_call.1} parent=1 // loop_header
      %s20 = sphi 0, %s24
      %p21 = scmp.ge.s32.totalorder %s20, 6
      %s30 = sphi 0, %s32
      %s33 = sphi 0, %s30
      %s34 = sphi 0, %s33
      %s50 = sphi 0, %s34
      %s54 = sphi 0, %s54
      %s56 = sphi 0, %s54
      %s57 = sphi 0, %s56
      %s71 = sphi 0, %s57
      %s75 = sphi 0, %s75
      %s77 = sphi 0, %s75
      %s78 = sphi 0, %s77
      %s92 = sphi 0, %s78
      %s96 = sphi 0, %s96
      %s98 = sphi 0, %s96
      %s99 = sphi 0, %s98
      %s113 = sphi 0, %s99
      %s117 = sphi 0, %s117
      %s119 = sphi 0, %s117
      %s120 = sphi 0, %s119
      %s134 = sphi 0, %s120
      %s138 = sphi 0, %s138
      %s140 = sphi 0, %s138
      %s141 = sphi 0, %s140
      %s155 = sphi 0, %s141
      %s161 = sphi 0, %s163
      %s164 = sphi 0, %s161
      %s165 = sphi 0, %s164
      %s181 = sphi 0, %s165
    $region4: #{tpu_custom_call.1} parent=1 // loop_header_branch
      %23 = sbr.rel (%p21) target = $region8
    $region5: #{tpu_custom_call.1} parent=1 // loop_body
      %s25 = ssub.s32 %s20, 1
      %s26 = ssub.s32 %s20, 2
      %s27 = sadd.s32 %s20, 1
      %s28 = ssub.s32 %s20, %s27
      %p29 = scmp.eq.s32.totalorder %s28, 0
      %s31 = sadd.s32 %s30, 1
      %s32 = scalar_select %p29, %s30, %s31
      %p35 = pneg %p29
      %p36 = scmp.eq.s32.totalorder %s20, 3
      %p37 = por %p35, %p36
      %p38 = scmp.ne.s32.totalorder %s30, %s33
      %p39 = scmp.eq.s32.totalorder %s20, 0
      %p40 = por %p38, %p39
      %p41 = scmp.ne.s32.totalorder %s30, %s33
      %p42 = scmp.eq.s32.totalorder %s25, 3
      %p43 = por %p41, %p42
      %p44 = scmp.ne.s32.totalorder %s33, %s34
      %p45 = scmp.eq.s32.totalorder %s25, 0
      %p46 = por %p44, %p45
      %p47 = scmp.ne.s32.totalorder %s33, %s34
      %p48 = scmp.eq.s32.totalorder %s26, 3
      %p49 = por %p47, %p48
      %p51 = scmp.ne.s32.totalorder %s34, %s50
      %p52 = scmp.eq.s32.totalorder %s26, 0
      %p53 = por %p51, %p52
      %s55 = sadd.s32 %s54, 1
      %p58 = scmp.eq.s32.totalorder %s20, 3
      %p59 = scmp.ne.s32.totalorder %s54, %s56
      %p60 = scmp.eq.s32.totalorder %s20, 0
      %p61 = por %p59, %p60
      %p62 = scmp.ne.s32.totalorder %s54, %s56
      %p63 = scmp.eq.s32.totalorder %s25, 3
      %p64 = por %p62, %p63
      %p65 = scmp.ne.s32.totalorder %s56, %s57
      %p66 = scmp.eq.s32.totalorder %s25, 0
      %p67 = por %p65, %p66
      %p68 = scmp.ne.s32.totalorder %s56, %s57
      %p69 = scmp.eq.s32.totalorder %s26, 3
      %p70 = por %p68, %p69
      %p72 = scmp.ne.s32.totalorder %s57, %s71
      %p73 = scmp.eq.s32.totalorder %s26, 0
      %p74 = por %p72, %p73
      %s76 = sadd.s32 %s75, 1
      %p79 = scmp.eq.s32.totalorder %s20, 3
      %p80 = scmp.ne.s32.totalorder %s75, %s77
      %p81 = scmp.eq.s32.totalorder %s20, 0
      %p82 = por %p80, %p81
      %p83 = scmp.ne.s32.totalorder %s75, %s77
      %p84 = scmp.eq.s32.totalorder %s25, 3
      %p85 = por %p83, %p84
      %p86 = scmp.ne.s32.totalorder %s77, %s78
      %p87 = scmp.eq.s32.totalorder %s25, 0
      %p88 = por %p86, %p87
      %p89 = scmp.ne.s32.totalorder %s77, %s78
      %p90 = scmp.eq.s32.totalorder %s26, 3
      %p91 = por %p89, %p90
      %p93 = scmp.ne.s32.totalorder %s78, %s92
      %p94 = scmp.eq.s32.totalorder %s26, 0
      %p95 = por %p93, %p94
      %s97 = sadd.s32 %s96, 1
      %p100 = scmp.eq.s32.totalorder %s20, 3
      %p101 = scmp.ne.s32.totalorder %s96, %s98
      %p102 = scmp.eq.s32.totalorder %s20, 0
      %p103 = por %p101, %p102
      %p104 = scmp.ne.s32.totalorder %s96, %s98
      %p105 = scmp.eq.s32.totalorder %s25, 3
      %p106 = por %p104, %p105
      %p107 = scmp.ne.s32.totalorder %s98, %s99
      %p108 = scmp.eq.s32.totalorder %s25, 0
      %p109 = por %p107, %p108
      %p110 = scmp.ne.s32.totalorder %s98, %s99
      %p111 = scmp.eq.s32.totalorder %s26, 3
      %p112 = por %p110, %p111
      %p114 = scmp.ne.s32.totalorder %s99, %s113
      %p115 = scmp.eq.s32.totalorder %s26, 0
      %p116 = por %p114, %p115
      %s118 = sadd.s32 %s117, 1
      %p121 = scmp.eq.s32.totalorder %s20, 3
      %p122 = scmp.ne.s32.totalorder %s117, %s119
      %p123 = scmp.eq.s32.totalorder %s20, 0
      %p124 = por %p122, %p123
      %p125 = scmp.ne.s32.totalorder %s117, %s119
      %p126 = scmp.eq.s32.totalorder %s25, 3
      %p127 = por %p125, %p126
      %p128 = scmp.ne.s32.totalorder %s119, %s120
      %p129 = scmp.eq.s32.totalorder %s25, 0
      %p130 = por %p128, %p129
      %p131 = scmp.ne.s32.totalorder %s119, %s120
      %p132 = scmp.eq.s32.totalorder %s26, 3
      %p133 = por %p131, %p132
      %p135 = scmp.ne.s32.totalorder %s120, %s134
      %p136 = scmp.eq.s32.totalorder %s26, 0
      %p137 = por %p135, %p136
      %s139 = sadd.s32 %s138, 1
      %p142 = scmp.eq.s32.totalorder %s20, 3
      %p143 = scmp.ne.s32.totalorder %s138, %s140
      %p144 = scmp.eq.s32.totalorder %s20, 0
      %p145 = por %p143, %p144
      %p146 = scmp.ne.s32.totalorder %s138, %s140
      %p147 = scmp.eq.s32.totalorder %s25, 3
      %p148 = por %p146, %p147
      %p149 = scmp.ne.s32.totalorder %s140, %s141
      %p150 = scmp.eq.s32.totalorder %s25, 0
      %p151 = por %p149, %p150
      %p152 = scmp.ne.s32.totalorder %s140, %s141
      %p153 = scmp.eq.s32.totalorder %s26, 3
      %p154 = por %p152, %p153
      %p156 = scmp.ne.s32.totalorder %s141, %s155
      %p157 = scmp.eq.s32.totalorder %s26, 0
      %p158 = por %p156, %p157
      %s159 = ssub.s32 %s20, %s27
      %p160 = scmp.eq.s32.totalorder %s159, 0
      %s162 = sadd.s32 %s161, 1
      %s163 = scalar_select %p160, %s161, %s162
      %p166 = pneg %p160
      %p167 = scmp.eq.s32.totalorder %s20, 3
      %p168 = por %p166, %p167
      %p169 = scmp.ne.s32.totalorder %s161, %s164
      %p170 = scmp.eq.s32.totalorder %s20, 0
      %p171 = por %p169, %p170
      %p172 = scmp.ne.s32.totalorder %s161, %s164
      %p173 = scmp.eq.s32.totalorder %s25, 3
      %p174 = por %p172, %p173
      %p175 = scmp.ne.s32.totalorder %s164, %s165
      %p176 = scmp.eq.s32.totalorder %s25, 0
      %p177 = por %p175, %p176
      %p178 = scmp.ne.s32.totalorder %s164, %s165
      %p179 = scmp.eq.s32.totalorder %s26, 3
      %p180 = por %p178, %p179
      %p182 = scmp.ne.s32.totalorder %s165, %s181
      %p183 = scmp.eq.s32.totalorder %s26, 0
      %p184 = por %p182, %p183
      %p185 = scmp.le.s32.totalorder 1, %s20
      %p186 = scmp.lt.s32.totalorder %s20, 5
      %p187 = pnand %p185, %p186
      %p188 = pneg %p187
      // Predicated region
      $region9: #{tpu_custom_call.1} parent=5 // pred_check
        _
      $region10: #{tpu_custom_call.1} parent=5 // pred_check_branch
        %190 = sbr.rel (%p187) target = $region12
      $region11: #{tpu_custom_call.1} parent=5 // pred_region
        %s191 = ssub.s32 %s20, 1
        // Predicated region
        $region13: #{tpu_custom_call.1} parent=11 // pred_check
          %p192 = pneg %p67
        $region14: #{tpu_custom_call.1} parent=11 // pred_check_branch
          %194 = sbr.rel (%p192) target = $region16
        $region15: #{tpu_custom_call.1} parent=11 // pred_region
          %196 = vsyncadd [#allocation6], 0
          %s197 = sshll.u32 %s1, 4
          %s198 = int_to_ptr.hbm [resolvable:$true] %s197
          %s199 = sshll.u32 [#allocation5], 4
          %s200 = int_to_ptr.vmem [resolvable:$true] %s199
          %205 = dma.hbm_to_vmem [thread:$0]  %s198, 256, %s200, [#allocation6], 64, 64, 4
        $region16: #{tpu_custom_call.1} parent=11 // pred_fallthru
          _
        // Predicated region
        $region17: #{tpu_custom_call.1} parent=11 // pred_check
          %p206 = pneg %p88
        $region18: #{tpu_custom_call.1} parent=11 // pred_check_branch
          %208 = sbr.rel (%p206) target = $region20
        $region19: #{tpu_custom_call.1} parent=11 // pred_region
          _
        $region20: #{tpu_custom_call.1} parent=11 // pred_fallthru
          _
        // Predicated region
        $region21: #{tpu_custom_call.1} parent=11 // pred_check
          %p209 = pneg %p109
        $region22: #{tpu_custom_call.1} parent=11 // pred_check_branch
          %211 = sbr.rel (%p209) target = $region24
        $region23: #{tpu_custom_call.1} parent=11 // pred_region
          %213 = vsyncadd [#allocation6], 0
          %s214 = sshll.u32 %s3, 4
          %s215 = int_to_ptr.hbm [resolvable:$true] %s214
          %s216 = sshll.u32 [#allocation7], 4
          %s217 = int_to_ptr.vmem [resolvable:$true] %s216
          %222 = dma.hbm_to_vmem [thread:$0]  %s215, 4096, %s217, [#allocation6], 128, 128, 8
        $region24: #{tpu_custom_call.1} parent=11 // pred_fallthru
          _
        // Predicated region
        $region25: #{tpu_custom_call.1} parent=11 // pred_check
          %p223 = pneg %p130
        $region26: #{tpu_custom_call.1} parent=11 // pred_check_branch
          %225 = sbr.rel (%p223) target = $region28
        $region27: #{tpu_custom_call.1} parent=11 // pred_region
          %227 = vsyncadd [#allocation9], 0
          %s228 = sshll.u32 %s4, 4
          %s229 = int_to_ptr.hbm [resolvable:$true] %s228
          %s230 = sshll.u32 [#allocation8], 4
          %s231 = int_to_ptr.vmem [resolvable:$true] %s230
          %236 = dma.hbm_to_vmem [thread:$0]  %s229, 256, %s231, [#allocation9], 64, 64, 4
        $region28: #{tpu_custom_call.1} parent=11 // pred_fallthru
          _
        // Predicated region
        $region29: #{tpu_custom_call.1} parent=11 // pred_check
          %p237 = pneg %p151
        $region30: #{tpu_custom_call.1} parent=11 // pred_check_branch
          %239 = sbr.rel (%p237) target = $region32
        $region31: #{tpu_custom_call.1} parent=11 // pred_region
          _
        $region32: #{tpu_custom_call.1} parent=11 // pred_fallthru
          _
      $region12: #{tpu_custom_call.1} parent=5 // pred_fallthru
        _
      %p240 = scmp.lt.s32.totalorder %s20, 4
      // Predicated region
      $region33: #{tpu_custom_call.1} parent=5 // pred_check
        %p241 = pneg %p240
      $region34: #{tpu_custom_call.1} parent=5 // pred_check_branch
        %243 = sbr.rel (%p241) target = $region36
      $region35: #{tpu_custom_call.1} parent=5 // pred_region
        // Predicated region
        $region37: #{tpu_custom_call.1} parent=35 // pred_check
          %p244 = pneg %p40
        $region38: #{tpu_custom_call.1} parent=35 // pred_check_branch
          %246 = sbr.rel (%p244) target = $region40
        $region39: #{tpu_custom_call.1} parent=35 // pred_region
          %s247 = sand.u32 %s30, 1
          %s248 = scalar_lea.sflag [#allocation3], %s247
          %s249 = sand.u32 %s30, 1
          %s250 = smul.addr %s249, 64
          %s251 = scalar_lea.vmem [#allocation2], %s250
          %s252 = smul.u32 4, %s20
          %254 = vsyncadd %s248, 0
          %s255 = smul.addr %s252, 2
          %s256 = smul.addr %s255, 8
          %s257 = scalar_lea.hbm %s0, %s256
          %s258 = sshll.u32 %s257, 4
          %s259 = int_to_ptr.hbm [resolvable:$true] %s258
          %s260 = sshll.u32 %s251, 4
          %s261 = int_to_ptr.vmem [resolvable:$true] %s260
          %266 = dma.hbm_to_vmem [thread:$0]  %s259, 1024, %s261, %s248, 128, 128, 8
        $region40: #{tpu_custom_call.1} parent=35 // pred_fallthru
          _
      $region36: #{tpu_custom_call.1} parent=5 // pred_fallthru
        _
      %p267 = scmp.le.s32.totalorder 1, %s20
      %p268 = scmp.lt.s32.totalorder %s20, 5
      %p269 = pnand %p267, %p268
      %p270 = pneg %p269
      // Predicated region
      $region41: #{tpu_custom_call.1} parent=5 // pred_check
        _
      $region42: #{tpu_custom_call.1} parent=5 // pred_check_branch
        %272 = sbr.rel (%p269) target = $region44
      $region43: #{tpu_custom_call.1} parent=5 // pred_region
        %s273 = ssub.s32 %s20, 1
        %s274 = sand.u32 %s33, 1
        %s275 = scalar_lea.sflag [#allocation3], %s274
        %s276 = sand.u32 %s33, 1
        %s277 = smul.addr %s276, 64
        %s278 = scalar_lea.vmem [#allocation2], %s277
        // Predicated region
        $region45: #{tpu_custom_call.1} parent=43 // pred_check
          %p279 = pneg %p46
        $region46: #{tpu_custom_call.1} parent=43 // pred_check_branch
          %281 = sbr.rel (%p279) target = $region48
        $region47: #{tpu_custom_call.1} parent=43 // pred_region
          %283 = dma.done %s275, 1024
        $region48: #{tpu_custom_call.1} parent=43 // pred_fallthru
          _
        // Predicated region
        $region49: #{tpu_custom_call.1} parent=43 // pred_check
          %p284 = pneg %p67
        $region50: #{tpu_custom_call.1} parent=43 // pred_check_branch
          %286 = sbr.rel (%p284) target = $region52
        $region51: #{tpu_custom_call.1} parent=43 // pred_region
          %288 = dma.done [#allocation6], 256
        $region52: #{tpu_custom_call.1} parent=43 // pred_fallthru
          _
        // Predicated region
        $region53: #{tpu_custom_call.1} parent=43 // pred_check
          %p289 = pneg %p109
        $region54: #{tpu_custom_call.1} parent=43 // pred_check_branch
          %291 = sbr.rel (%p289) target = $region56
        $region55: #{tpu_custom_call.1} parent=43 // pred_region
          %293 = dma.done [#allocation6], 4096
        $region56: #{tpu_custom_call.1} parent=43 // pred_fallthru
          _
        // Predicated region
        $region57: #{tpu_custom_call.1} parent=43 // pred_check
          %p294 = pneg %p130
        $region58: #{tpu_custom_call.1} parent=43 // pred_check_branch
          %296 = sbr.rel (%p294) target = $region60
        $region59: #{tpu_custom_call.1} parent=43 // pred_region
          %298 = dma.done [#allocation9], 256
        $region60: #{tpu_custom_call.1} parent=43 // pred_fallthru
          _
        %s299 = sand.u32 %s33, 1
        %s300 = scalar_lea.sflag [#allocation3], %s299
        %s301 = sand.u32 %s33, 1
        %s302 = smul.addr %s301, 64
        %s303 = scalar_lea.vmem [#allocation2], %s302
        %p304 = pneg %p46
        %p305 = pneg %p43
        %p306 = pneg %p67
        %p307 = pneg %p64
        %p308 = pneg %p88
        %p309 = pneg %p85
        %p310 = pneg %p109
        %p311 = pneg %p106
        %p312 = pneg %p130
        %p313 = pneg %p127
        %p314 = pneg %p151
        %p315 = pneg %p148
        %p316 = pneg %p177
        %p317 = pneg %p174
        %s318 = sand.u32 %s164, 1
        %s319 = scalar_lea.sflag [#allocation4], %s318
        %s320 = sand.u32 %s164, 1
        %s321 = smul.addr %s320, 64
        %s322 = scalar_lea.vmem [#allocation10], %s321
        %s323 = smul.u32 4, %s25
        %s324 = smul.u32 4, %s25
        %v326 = vld [vmem:[%s278] sm:$0xff]
        %v327 = vld [vmem:[%s278 + $0x8] sm:$0xff]
        %v328 = vld [vmem:[%s278 + $0x10] sm:$0xff]
        %v329 = vld [vmem:[%s278 + $0x18] sm:$0xff]
        %v330 = vld [vmem:[%s278 + $0x20] sm:$0xff]
        %v331 = vld [vmem:[%s278 + $0x28] sm:$0xff]
        %v332 = vld [vmem:[%s278 + $0x30] sm:$0xff]
        %v333 = vld [vmem:[%s278 + $0x38] sm:$0xff]
        %v334 = vpack.c.bf16 %v327, %v326
        %v335 = vpack.c.bf16 %v329, %v328
        %v336 = vpack.c.bf16 %v331, %v330
        %v337 = vpack.c.bf16 %v333, %v332
        %v338 = vld [vmem:[#allocation5] sm:$0xf]
        %v339 = vld [vmem:[#allocation5 + $0x4] sm:$0xf]
        %v340 = vld [vmem:[#allocation5 + $0x8] sm:$0xf]
        %v341 = vld [vmem:[#allocation5 + $0xc] sm:$0xf]
        %v342 = vld [vmem:[%s2] sm:$0x1]
        %v344 = vperm.slane %v342, 0
        %v350 = vunpack.c.l.b16 %v338
        %v351 = vunpack.c.l.b16 %v339
        %v352 = vunpack.c.l.b16 %v340
        %v353 = vunpack.c.l.b16 %v341
        %v354 = vpack.c.b16 %v351, %v350
        %v355 = vpack.c.b16 %v353, %v352
        %vm358 = vcmask 261120
        %v360 = vsel %vm358, %v334, 0
        %v363 = vsel %vm358, %v335, 0
        %v366 = vsel %vm358, %v336, 0
        %v369 = vsel %vm358, %v337, 0
        %371 = vmatpush.bf16.msra.mxu0 0
        %372 = vmatpush.bf16.msra.mxu0 0
        %373 = vmatpush.bf16.msra.mxu0 0
        %374 = vmatpush.bf16.msra.mxu0 0
        %375 = vmatpush.bf16.msra.mxu0 0
        %376 = vmatpush.bf16.msra.mxu0 0
        %377 = vmatpush.bf16.msra.mxu0 %v355
        %378 = vmatpush.bf16.msra.mxu0 %v354
        %379 = vmatmul.bf16.gmra.mxu0 %v360
        %v380 = vpop.f32.mrf.mxu0
        %v381 = vadd.f32 %v344, %v380
        %v382 = vpop.f32.mrf.mxu0
        %v383 = vadd.f32 %v344, %v382
        %384 = vmatmul.bf16.gmra.mxu0 %v363
        %v385 = vpop.f32.mrf.mxu0
        %v386 = vadd.f32 %v344, %v385
        %v387 = vpop.f32.mrf.mxu0
        %v388 = vadd.f32 %v344, %v387
        %389 = vmatmul.bf16.gmra.mxu0 %v366
        %v390 = vpop.f32.mrf.mxu0
        %v391 = vadd.f32 %v344, %v390
        %v392 = vpop.f32.mrf.mxu0
        %v393 = vadd.f32 %v344, %v392
        %394 = vmatmul.bf16.gmra.mxu0 %v369
        %v395 = vpop.f32.mrf.mxu0
        %v396 = vadd.f32 %v344, %v395
        %v397 = vpop.f32.mrf.mxu0
        %v398 = vadd.f32 %v344, %v397
        %399 = vdwg.mxu0
        %v400 = vpack.c.bf16 %v381, %v381
        %v401 = vpack.c.bf16 %v383, %v383
        %v402 = vpack.c.bf16 %v386, %v386
        %v403 = vpack.c.bf16 %v388, %v388
        %v404 = vpack.c.bf16 %v391, %v391
        %v405 = vpack.c.bf16 %v393, %v393
        %v406 = vpack.c.bf16 %v396, %v396
        %v407 = vpack.c.bf16 %v398, %v398
        %v408 = vld [vmem:[#allocation7] sm:$0xff]
        %v409 = vld [vmem:[#allocation7 + $0x8] sm:$0xff]
        %v410 = vld [vmem:[#allocation7 + $0x10] sm:$0xff]
        %v411 = vld [vmem:[#allocation7 + $0x18] sm:$0xff]
        %v412 = vld [vmem:[#allocation7 + $0x20] sm:$0xff]
        %v413 = vld [vmem:[#allocation7 + $0x28] sm:$0xff]
        %v414 = vld [vmem:[#allocation7 + $0x30] sm:$0xff]
        %v415 = vld [vmem:[#allocation7 + $0x38] sm:$0xff]
        %v416 = vld [vmem:[#allocation7 + $0x40] sm:$0xff]
        %v417 = vld [vmem:[#allocation7 + $0x48] sm:$0xff]
        %v418 = vld [vmem:[#allocation7 + $0x50] sm:$0xff]
        %v419 = vld [vmem:[#allocation7 + $0x58] sm:$0xff]
        %v420 = vld [vmem:[#allocation7 + $0x60] sm:$0xff]
        %v421 = vld [vmem:[#allocation7 + $0x68] sm:$0xff]
        %v422 = vld [vmem:[#allocation7 + $0x70] sm:$0xff]
        %v423 = vld [vmem:[#allocation7 + $0x78] sm:$0xff]
        %v424 = vld [vmem:[#allocation7 + $0x80] sm:$0xff]
        %v425 = vld [vmem:[#allocation7 + $0x88] sm:$0xff]
        %v426 = vld [vmem:[#allocation7 + $0x90] sm:$0xff]
        %v427 = vld [vmem:[#allocation7 + $0x98] sm:$0xff]
        %v428 = vld [vmem:[#allocation7 + $0xa0] sm:$0xff]
        %v429 = vld [vmem:[#allocation7 + $0xa8] sm:$0xff]
        %v430 = vld [vmem:[#allocation7 + $0xb0] sm:$0xff]
        %v431 = vld [vmem:[#allocation7 + $0xb8] sm:$0xff]
        %v432 = vld [vmem:[#allocation7 + $0xc0] sm:$0xff]
        %v433 = vld [vmem:[#allocation7 + $0xc8] sm:$0xff]
        %v434 = vld [vmem:[#allocation7 + $0xd0] sm:$0xff]
        %v435 = vld [vmem:[#allocation7 + $0xd8] sm:$0xff]
        %v436 = vld [vmem:[#allocation7 + $0xe0] sm:$0xff]
        %v437 = vld [vmem:[#allocation7 + $0xe8] sm:$0xff]
        %v438 = vld [vmem:[#allocation7 + $0xf0] sm:$0xff]
        %v439 = vld [vmem:[#allocation7 + $0xf8] sm:$0xff]
        %v442 = vunpack.c.l.b16 %v400
        %v443 = vunpack.c.l.b16 %v401
        %v444 = vpack.c.b16 %v443, %v442
        %445 = vrot.lane.b32.xlu0 %v444, 96
        %v446 = vpop.permute.xlu0 %445
        %vm447 = vcmask 64512
        %v449 = vsel %vm447, %v444, 0
        %v452 = vsel %vm447, %v446, 0
        %454 = vmatpush.bf16.xpose.msra.mxu0 0
        %455 = vmatpush.bf16.xpose.msra.mxu0 0
        %456 = vmatpush.bf16.xpose.msra.mxu0 0
        %457 = vmatpush.bf16.xpose.msra.mxu0 0
        %458 = vmatpush.bf16.xpose.msra.mxu0 0
        %459 = vmatpush.bf16.xpose.msra.mxu0 0
        %460 = vmatpush.bf16.xpose.msra.mxu0 0
        %461 = vmatpush.bf16.xpose.msra.mxu0 %v452
        %462 = vmatmul.bf16.gmra.mxu0 %v449
        %v463 = vpop.f32.mrf.mxu0
        %v464 = vadd.f32 0.0, %v463
        %v465 = vpop.f32.mrf.mxu0
        %v466 = vadd.f32 0.0, %v465
        %467 = vdwg.mxu0
        %v470 = vunpack.c.l.b16 %v402
        %v471 = vunpack.c.l.b16 %v403
        %v472 = vpack.c.b16 %v471, %v470
        %473 = vrot.lane.b32.xlu0 %v472, 96
        %v474 = vpop.permute.xlu0 %473
        %v476 = vsel %vm447, %v472, 0
        %v479 = vsel %vm447, %v474, 0
        %481 = vmatpush.bf16.xpose.msra.mxu0 0
        %482 = vmatpush.bf16.xpose.msra.mxu0 0
        %483 = vmatpush.bf16.xpose.msra.mxu0 0
        %484 = vmatpush.bf16.xpose.msra.mxu0 0
        %485 = vmatpush.bf16.xpose.msra.mxu0 0
        %486 = vmatpush.bf16.xpose.msra.mxu0 0
        %487 = vmatpush.bf16.xpose.msra.mxu0 0
        %488 = vmatpush.bf16.xpose.msra.mxu0 %v479
        %489 = vmatmul.bf16.gmra.mxu0 %v476
        %v490 = vpop.f32.mrf.mxu0
        %v491 = vadd.f32 0.0, %v490
        %v492 = vpop.f32.mrf.mxu0
        %v493 = vadd.f32 0.0, %v492
        %494 = vdwg.mxu0
        %v497 = vunpack.c.l.b16 %v404
        %v498 = vunpack.c.l.b16 %v405
        %v499 = vpack.c.b16 %v498, %v497
        %500 = vrot.lane.b32.xlu0 %v499, 96
        %v501 = vpop.permute.xlu0 %500
        %v503 = vsel %vm447, %v499, 0
        %v506 = vsel %vm447, %v501, 0
        %508 = vmatpush.bf16.xpose.msra.mxu0 0
        %509 = vmatpush.bf16.xpose.msra.mxu0 0
        %510 = vmatpush.bf16.xpose.msra.mxu0 0
        %511 = vmatpush.bf16.xpose.msra.mxu0 0
        %512 = vmatpush.bf16.xpose.msra.mxu0 0
        %513 = vmatpush.bf16.xpose.msra.mxu0 0
        %514 = vmatpush.bf16.xpose.msra.mxu0 0
        %515 = vmatpush.bf16.xpose.msra.mxu0 %v506
        %516 = vmatmul.bf16.gmra.mxu0 %v503
        %v517 = vpop.f32.mrf.mxu0
        %v518 = vadd.f32 0.0, %v517
        %v519 = vpop.f32.mrf.mxu0
        %v520 = vadd.f32 0.0, %v519
        %521 = vdwg.mxu0
        %v524 = vunpack.c.l.b16 %v406
        %v525 = vunpack.c.l.b16 %v407
        %v526 = vpack.c.b16 %v525, %v524
        %527 = vrot.lane.b32.xlu0 %v526, 96
        %v528 = vpop.permute.xlu0 %527
        %v530 = vsel %vm447, %v526, 0
        %v533 = vsel %vm447, %v528, 0
        %535 = vmatpush.bf16.xpose.msra.mxu0 0
        %536 = vmatpush.bf16.xpose.msra.mxu0 0
        %537 = vmatpush.bf16.xpose.msra.mxu0 0
        %538 = vmatpush.bf16.xpose.msra.mxu0 0
        %539 = vmatpush.bf16.xpose.msra.mxu0 0
        %540 = vmatpush.bf16.xpose.msra.mxu0 0
        %541 = vmatpush.bf16.xpose.msra.mxu0 0
        %542 = vmatpush.bf16.xpose.msra.mxu0 %v533
        %543 = vmatmul.bf16.gmra.mxu0 %v530
        %v544 = vpop.f32.mrf.mxu0
        %v545 = vadd.f32 0.0, %v544
        %v546 = vpop.f32.mrf.mxu0
        %v547 = vadd.f32 0.0, %v546
        %548 = vdwg.mxu0
        %v549 = vadd.f32 %v464, %v408
        %v550 = vadd.f32 %v466, %v409
        %v551 = vadd.f32 %v491, %v410
        %v552 = vadd.f32 %v493, %v411
        %v553 = vadd.f32 %v518, %v412
        %v554 = vadd.f32 %v520, %v413
        %v555 = vadd.f32 %v545, %v414
        %v556 = vadd.f32 %v547, %v415
        %vm557 = vcmask 130048
        %v558 = vsel %vm557, %v549, -inf
        %559 = vmax.xlane.f32.xlu0 %v558
        %v560 = vpop.xlane.xlu0 %559
        %v561 = vsel %vm557, %v550, -inf
        %562 = vmax.xlane.f32.xlu0 %v561
        %v563 = vpop.xlane.xlu0 %562
        %v564 = vsel %vm557, %v551, -inf
        %565 = vmax.xlane.f32.xlu0 %v564
        %v566 = vpop.xlane.xlu0 %565
        %v567 = vsel %vm557, %v552, -inf
        %568 = vmax.xlane.f32.xlu0 %v567
        %v569 = vpop.xlane.xlu0 %568
        %v570 = vsel %vm557, %v553, -inf
        %571 = vmax.xlane.f32.xlu0 %v570
        %v572 = vpop.xlane.xlu0 %571
        %v573 = vsel %vm557, %v554, -inf
        %574 = vmax.xlane.f32.xlu0 %v573
        %v575 = vpop.xlane.xlu0 %574
        %v576 = vsel %vm557, %v555, -inf
        %577 = vmax.xlane.f32.xlu0 %v576
        %v578 = vpop.xlane.xlu0 %577
        %v579 = vsel %vm557, %v556, -inf
        %580 = vmax.xlane.f32.xlu0 %v579
        %v581 = vpop.xlane.xlu0 %580
        %v582 = vsub.f32 %v549, %v560
        %v583 = vsub.f32 %v550, %v563
        %v584 = vsub.f32 %v551, %v566
        %v585 = vsub.f32 %v552, %v569
        %v586 = vsub.f32 %v553, %v572
        %v587 = vsub.f32 %v554, %v575
        %v588 = vsub.f32 %v555, %v578
        %v589 = vsub.f32 %v556, %v581
        %v590 = vmul.f32 %v582, 1.442695
        %v591 = vpow.pop %v590
        %v592 = vmul.f32 %v583, 1.442695
        %v593 = vpow.pop %v592
        %v594 = vmul.f32 %v584, 1.442695
        %v595 = vpow.pop %v594
        %v596 = vmul.f32 %v585, 1.442695
        %v597 = vpow.pop %v596
        %v598 = vmul.f32 %v586, 1.442695
        %v599 = vpow.pop %v598
        %v600 = vmul.f32 %v587, 1.442695
        %v601 = vpow.pop %v600
        %v602 = vmul.f32 %v588, 1.442695
        %v603 = vpow.pop %v602
        %v604 = vmul.f32 %v589, 1.442695
        %v605 = vpow.pop %v604
        %v606 = vsel %vm557, %v591, 0.0
        %607 = vadd.xlane.f32.xlu0 %v606
        %v608 = vpop.xlane.xlu0 %607
        %v609 = vsel %vm557, %v593, 0.0
        %610 = vadd.xlane.f32.xlu0 %v609
        %v611 = vpop.xlane.xlu0 %610
        %v612 = vsel %vm557, %v595, 0.0
        %613 = vadd.xlane.f32.xlu0 %v612
        %v614 = vpop.xlane.xlu0 %613
        %v615 = vsel %vm557, %v597, 0.0
        %616 = vadd.xlane.f32.xlu0 %v615
        %v617 = vpop.xlane.xlu0 %616
        %v618 = vsel %vm557, %v599, 0.0
        %619 = vadd.xlane.f32.xlu0 %v618
        %v620 = vpop.xlane.xlu0 %619
        %v621 = vsel %vm557, %v601, 0.0
        %622 = vadd.xlane.f32.xlu0 %v621
        %v623 = vpop.xlane.xlu0 %622
        %v624 = vsel %vm557, %v603, 0.0
        %625 = vadd.xlane.f32.xlu0 %v624
        %v626 = vpop.xlane.xlu0 %625
        %v627 = vsel %vm557, %v605, 0.0
        %628 = vadd.xlane.f32.xlu0 %v627
        %v629 = vpop.xlane.xlu0 %628
        %v630 = vrcp.pop %v608
        %v631 = vrcp.pop %v611
        %v632 = vrcp.pop %v614
        %v633 = vrcp.pop %v617
        %v634 = vrcp.pop %v620
        %v635 = vrcp.pop %v623
        %v636 = vrcp.pop %v626
        %v637 = vrcp.pop %v629
        %v638 = vmul.f32 %v591, %v630
        %v639 = vmul.f32 %v593, %v631
        %v640 = vmul.f32 %v595, %v632
        %v641 = vmul.f32 %v597, %v633
        %v642 = vmul.f32 %v599, %v634
        %v643 = vmul.f32 %v601, %v635
        %v644 = vmul.f32 %v603, %v636
        %v645 = vmul.f32 %v605, %v637
        %v646 = vpack.c.bf16 %v638, %v638
        %v647 = vpack.c.bf16 %v639, %v639
        %v648 = vpack.c.bf16 %v640, %v640
        %v649 = vpack.c.bf16 %v641, %v641
        %v650 = vpack.c.bf16 %v642, %v642
        %v651 = vpack.c.bf16 %v643, %v643
        %v652 = vpack.c.bf16 %v644, %v644
        %v653 = vpack.c.bf16 %v645, %v645
        %v656 = vunpack.c.l.b16 %v646
        %v657 = vunpack.c.l.b16 %v647
        %v658 = vpack.c.b16 %v657, %v656
        %659 = vrot.lane.b32.xlu0 %v444, 64
        %v660 = vpop.permute.xlu0 %659
        %v663 = vsel %vm557, %v658, 0
        %665 = vmatpush.bf16.msra.mxu0 0
        %666 = vmatpush.bf16.msra.mxu0 0
        %667 = vmatpush.bf16.msra.mxu0 0
        %668 = vmatpush.bf16.msra.mxu0 0
        %669 = vmatpush.bf16.msra.mxu0 0
        %670 = vmatpush.bf16.msra.mxu0 0
        %671 = vmatpush.bf16.msra.mxu0 0
        %672 = vmatpush.bf16.msra.mxu0 %v660
        %673 = vmatmul.bf16.gmra.mxu0 %v663
        %v674 = vpop.f32.mrf.mxu0
        %v675 = vadd.f32 0.0, %v674
        %v676 = vpop.f32.mrf.mxu0
        %v677 = vadd.f32 0.0, %v676
        %678 = vdwg.mxu0
        %v681 = vunpack.c.l.b16 %v648
        %v682 = vunpack.c.l.b16 %v649
        %v683 = vpack.c.b16 %v682, %v681
        %684 = vrot.lane.b32.xlu0 %v472, 64
        %v685 = vpop.permute.xlu0 %684
        %v688 = vsel %vm557, %v683, 0
        %690 = vmatpush.bf16.msra.mxu0 0
        %691 = vmatpush.bf16.msra.mxu0 0
        %692 = vmatpush.bf16.msra.mxu0 0
        %693 = vmatpush.bf16.msra.mxu0 0
        %694 = vmatpush.bf16.msra.mxu0 0
        %695 = vmatpush.bf16.msra.mxu0 0
        %696 = vmatpush.bf16.msra.mxu0 0
        %697 = vmatpush.bf16.msra.mxu0 %v685
        %698 = vmatmul.bf16.gmra.mxu0 %v688
        %v699 = vpop.f32.mrf.mxu0
        %v700 = vadd.f32 0.0, %v699
        %v701 = vpop.f32.mrf.mxu0
        %v702 = vadd.f32 0.0, %v701
        %703 = vdwg.mxu0
        %v706 = vunpack.c.l.b16 %v650
        %v707 = vunpack.c.l.b16 %v651
        %v708 = vpack.c.b16 %v707, %v706
        %709 = vrot.lane.b32.xlu0 %v499, 64
        %v710 = vpop.permute.xlu0 %709
        %v713 = vsel %vm557, %v708, 0
        %715 = vmatpush.bf16.msra.mxu0 0
        %716 = vmatpush.bf16.msra.mxu0 0
        %717 = vmatpush.bf16.msra.mxu0 0
        %718 = vmatpush.bf16.msra.mxu0 0
        %719 = vmatpush.bf16.msra.mxu0 0
        %720 = vmatpush.bf16.msra.mxu0 0
        %721 = vmatpush.bf16.msra.mxu0 0
        %722 = vmatpush.bf16.msra.mxu0 %v710
        %723 = vmatmul.bf16.gmra.mxu0 %v713
        %v724 = vpop.f32.mrf.mxu0
        %v725 = vadd.f32 0.0, %v724
        %v726 = vpop.f32.mrf.mxu0
        %v727 = vadd.f32 0.0, %v726
        %728 = vdwg.mxu0
        %v731 = vunpack.c.l.b16 %v652
        %v732 = vunpack.c.l.b16 %v653
        %v733 = vpack.c.b16 %v732, %v731
        %734 = vrot.lane.b32.xlu0 %v526, 64
        %v735 = vpop.permute.xlu0 %734
        %v738 = vsel %vm557, %v733, 0
        %740 = vmatpush.bf16.msra.mxu0 0
        %741 = vmatpush.bf16.msra.mxu0 0
        %742 = vmatpush.bf16.msra.mxu0 0
        %743 = vmatpush.bf16.msra.mxu0 0
        %744 = vmatpush.bf16.msra.mxu0 0
        %745 = vmatpush.bf16.msra.mxu0 0
        %746 = vmatpush.bf16.msra.mxu0 0
        %747 = vmatpush.bf16.msra.mxu0 %v735
        %748 = vmatmul.bf16.gmra.mxu0 %v738
        %v749 = vpop.f32.mrf.mxu0
        %v750 = vadd.f32 0.0, %v749
        %v751 = vpop.f32.mrf.mxu0
        %v752 = vadd.f32 0.0, %v751
        %753 = vdwg.mxu0
        %754 = vrot.lane.b32.xlu0 %v444, 120
        %v755 = vpop.permute.xlu0 %754
        %756 = vrot.lane.b32.xlu0 %v444, 88
        %v757 = vpop.permute.xlu0 %756
        %v759 = vsel %vm447, %v755, 0
        %v762 = vsel %vm447, %v757, 0
        %764 = vmatpush.bf16.xpose.msra.mxu0 0
        %765 = vmatpush.bf16.xpose.msra.mxu0 0
        %766 = vmatpush.bf16.xpose.msra.mxu0 0
        %767 = vmatpush.bf16.xpose.msra.mxu0 0
        %768 = vmatpush.bf16.xpose.msra.mxu0 0
        %769 = vmatpush.bf16.xpose.msra.mxu0 0
        %770 = vmatpush.bf16.xpose.msra.mxu0 0
        %771 = vmatpush.bf16.xpose.msra.mxu0 %v762
        %772 = vmatmul.bf16.gmra.mxu0 %v759
        %v773 = vpop.f32.mrf.mxu0
        %v774 = vadd.f32 0.0, %v773
        %v775 = vpop.f32.mrf.mxu0
        %v776 = vadd.f32 0.0, %v775
        %777 = vdwg.mxu0
        %778 = vrot.lane.b32.xlu0 %v472, 120
        %v779 = vpop.permute.xlu0 %778
        %780 = vrot.lane.b32.xlu0 %v472, 88
        %v781 = vpop.permute.xlu0 %780
        %v783 = vsel %vm447, %v779, 0
        %v786 = vsel %vm447, %v781, 0
        %788 = vmatpush.bf16.xpose.msra.mxu0 0
        %789 = vmatpush.bf16.xpose.msra.mxu0 0
        %790 = vmatpush.bf16.xpose.msra.mxu0 0
        %791 = vmatpush.bf16.xpose.msra.mxu0 0
        %792 = vmatpush.bf16.xpose.msra.mxu0 0
        %793 = vmatpush.bf16.xpose.msra.mxu0 0
        %794 = vmatpush.bf16.xpose.msra.mxu0 0
        %795 = vmatpush.bf16.xpose.msra.mxu0 %v786
        %796 = vmatmul.bf16.gmra.mxu0 %v783
        %v797 = vpop.f32.mrf.mxu0
        %v798 = vadd.f32 0.0, %v797
        %v799 = vpop.f32.mrf.mxu0
        %v800 = vadd.f32 0.0, %v799
        %801 = vdwg.mxu0
        %802 = vrot.lane.b32.xlu0 %v499, 120
        %v803 = vpop.permute.xlu0 %802
        %804 = vrot.lane.b32.xlu0 %v499, 88
        %v805 = vpop.permute.xlu0 %804
        %v807 = vsel %vm447, %v803, 0
        %v810 = vsel %vm447, %v805, 0
        %812 = vmatpush.bf16.xpose.msra.mxu0 0
        %813 = vmatpush.bf16.xpose.msra.mxu0 0
        %814 = vmatpush.bf16.xpose.msra.mxu0 0
        %815 = vmatpush.bf16.xpose.msra.mxu0 0
        %816 = vmatpush.bf16.xpose.msra.mxu0 0
        %817 = vmatpush.bf16.xpose.msra.mxu0 0
        %818 = vmatpush.bf16.xpose.msra.mxu0 0
        %819 = vmatpush.bf16.xpose.msra.mxu0 %v810
        %820 = vmatmul.bf16.gmra.mxu0 %v807
        %v821 = vpop.f32.mrf.mxu0
        %v822 = vadd.f32 0.0, %v821
        %v823 = vpop.f32.mrf.mxu0
        %v824 = vadd.f32 0.0, %v823
        %825 = vdwg.mxu0
        %826 = vrot.lane.b32.xlu0 %v526, 120
        %v827 = vpop.permute.xlu0 %826
        %828 = vrot.lane.b32.xlu0 %v526, 88
        %v829 = vpop.permute.xlu0 %828
        %v831 = vsel %vm447, %v827, 0
        %v834 = vsel %vm447, %v829, 0
        %836 = vmatpush.bf16.xpose.msra.mxu0 0
        %837 = vmatpush.bf16.xpose.msra.mxu0 0
        %838 = vmatpush.bf16.xpose.msra.mxu0 0
        %839 = vmatpush.bf16.xpose.msra.mxu0 0
        %840 = vmatpush.bf16.xpose.msra.mxu0 0
        %841 = vmatpush.bf16.xpose.msra.mxu0 0
        %842 = vmatpush.bf16.xpose.msra.mxu0 0
        %843 = vmatpush.bf16.xpose.msra.mxu0 %v834
        %844 = vmatmul.bf16.gmra.mxu0 %v831
        %v845 = vpop.f32.mrf.mxu0
        %v846 = vadd.f32 0.0, %v845
        %v847 = vpop.f32.mrf.mxu0
        %v848 = vadd.f32 0.0, %v847
        %849 = vdwg.mxu0
        %v850 = vadd.f32 %v774, %v416
        %v851 = vadd.f32 %v776, %v417
        %v852 = vadd.f32 %v798, %v418
        %v853 = vadd.f32 %v800, %v419
        %v854 = vadd.f32 %v822, %v420
        %v855 = vadd.f32 %v824, %v421
        %v856 = vadd.f32 %v846, %v422
        %v857 = vadd.f32 %v848, %v423
        %v858 = vsel %vm557, %v850, -inf
        %859 = vmax.xlane.f32.xlu0 %v858
        %v860 = vpop.xlane.xlu0 %859
        %v861 = vsel %vm557, %v851, -inf
        %862 = vmax.xlane.f32.xlu0 %v861
        %v863 = vpop.xlane.xlu0 %862
        %v864 = vsel %vm557, %v852, -inf
        %865 = vmax.xlane.f32.xlu0 %v864
        %v866 = vpop.xlane.xlu0 %865
        %v867 = vsel %vm557, %v853, -inf
        %868 = vmax.xlane.f32.xlu0 %v867
        %v869 = vpop.xlane.xlu0 %868
        %v870 = vsel %vm557, %v854, -inf
        %871 = vmax.xlane.f32.xlu0 %v870
        %v872 = vpop.xlane.xlu0 %871
        %v873 = vsel %vm557, %v855, -inf
        %874 = vmax.xlane.f32.xlu0 %v873
        %v875 = vpop.xlane.xlu0 %874
        %v876 = vsel %vm557, %v856, -inf
        %877 = vmax.xlane.f32.xlu0 %v876
        %v878 = vpop.xlane.xlu0 %877
        %v879 = vsel %vm557, %v857, -inf
        %880 = vmax.xlane.f32.xlu0 %v879
        %v881 = vpop.xlane.xlu0 %880
        %v882 = vsub.f32 %v850, %v860
        %v883 = vsub.f32 %v851, %v863
        %v884 = vsub.f32 %v852, %v866
        %v885 = vsub.f32 %v853, %v869
        %v886 = vsub.f32 %v854, %v872
        %v887 = vsub.f32 %v855, %v875
        %v888 = vsub.f32 %v856, %v878
        %v889 = vsub.f32 %v857, %v881
        %v890 = vmul.f32 %v882, 1.442695
        %v891 = vpow.pop %v890
        %v892 = vmul.f32 %v883, 1.442695
        %v893 = vpow.pop %v892
        %v894 = vmul.f32 %v884, 1.442695
        %v895 = vpow.pop %v894
        %v896 = vmul.f32 %v885, 1.442695
        %v897 = vpow.pop %v896
        %v898 = vmul.f32 %v886, 1.442695
        %v899 = vpow.pop %v898
        %v900 = vmul.f32 %v887, 1.442695
        %v901 = vpow.pop %v900
        %v902 = vmul.f32 %v888, 1.442695
        %v903 = vpow.pop %v902
        %v904 = vmul.f32 %v889, 1.442695
        %v905 = vpow.pop %v904
        %v906 = vsel %vm557, %v891, 0.0
        %907 = vadd.xlane.f32.xlu0 %v906
        %v908 = vpop.xlane.xlu0 %907
        %v909 = vsel %vm557, %v893, 0.0
        %910 = vadd.xlane.f32.xlu0 %v909
        %v911 = vpop.xlane.xlu0 %910
        %v912 = vsel %vm557, %v895, 0.0
        %913 = vadd.xlane.f32.xlu0 %v912
        %v914 = vpop.xlane.xlu0 %913
        %v915 = vsel %vm557, %v897, 0.0
        %916 = vadd.xlane.f32.xlu0 %v915
        %v917 = vpop.xlane.xlu0 %916
        %v918 = vsel %vm557, %v899, 0.0
        %919 = vadd.xlane.f32.xlu0 %v918
        %v920 = vpop.xlane.xlu0 %919
        %v921 = vsel %vm557, %v901, 0.0
        %922 = vadd.xlane.f32.xlu0 %v921
        %v923 = vpop.xlane.xlu0 %922
        %v924 = vsel %vm557, %v903, 0.0
        %925 = vadd.xlane.f32.xlu0 %v924
        %v926 = vpop.xlane.xlu0 %925
        %v927 = vsel %vm557, %v905, 0.0
        %928 = vadd.xlane.f32.xlu0 %v927
        %v929 = vpop.xlane.xlu0 %928
        %v930 = vrcp.pop %v908
        %v931 = vrcp.pop %v911
        %v932 = vrcp.pop %v914
        %v933 = vrcp.pop %v917
        %v934 = vrcp.pop %v920
        %v935 = vrcp.pop %v923
        %v936 = vrcp.pop %v926
        %v937 = vrcp.pop %v929
        %v938 = vmul.f32 %v891, %v930
        %v939 = vmul.f32 %v893, %v931
        %v940 = vmul.f32 %v895, %v932
        %v941 = vmul.f32 %v897, %v933
        %v942 = vmul.f32 %v899, %v934
        %v943 = vmul.f32 %v901, %v935
        %v944 = vmul.f32 %v903, %v936
        %v945 = vmul.f32 %v905, %v937
        %v946 = vpack.c.bf16 %v938, %v938
        %v947 = vpack.c.bf16 %v939, %v939
        %v948 = vpack.c.bf16 %v940, %v940
        %v949 = vpack.c.bf16 %v941, %v941
        %v950 = vpack.c.bf16 %v942, %v942
        %v951 = vpack.c.bf16 %v943, %v943
        %v952 = vpack.c.bf16 %v944, %v944
        %v953 = vpack.c.bf16 %v945, %v945
        %v956 = vunpack.c.l.b16 %v946
        %v957 = vunpack.c.l.b16 %v947
        %v958 = vpack.c.b16 %v957, %v956
        %959 = vrot.lane.b32.xlu0 %v444, 56
        %v960 = vpop.permute.xlu0 %959
        %v963 = vsel %vm557, %v958, 0
        %965 = vmatpush.bf16.msra.mxu0 0
        %966 = vmatpush.bf16.msra.mxu0 0
        %967 = vmatpush.bf16.msra.mxu0 0
        %968 = vmatpush.bf16.msra.mxu0 0
        %969 = vmatpush.bf16.msra.mxu0 0
        %970 = vmatpush.bf16.msra.mxu0 0
        %971 = vmatpush.bf16.msra.mxu0 0
        %972 = vmatpush.bf16.msra.mxu0 %v960
        %973 = vmatmul.bf16.gmra.mxu0 %v963
        %v974 = vpop.f32.mrf.mxu0
        %v975 = vadd.f32 0.0, %v974
        %v976 = vpop.f32.mrf.mxu0
        %v977 = vadd.f32 0.0, %v976
        %978 = vdwg.mxu0
        %v981 = vunpack.c.l.b16 %v948
        %v982 = vunpack.c.l.b16 %v949
        %v983 = vpack.c.b16 %v982, %v981
        %984 = vrot.lane.b32.xlu0 %v472, 56
        %v985 = vpop.permute.xlu0 %984
        %v988 = vsel %vm557, %v983, 0
        %990 = vmatpush.bf16.msra.mxu0 0
        %991 = vmatpush.bf16.msra.mxu0 0
        %992 = vmatpush.bf16.msra.mxu0 0
        %993 = vmatpush.bf16.msra.mxu0 0
        %994 = vmatpush.bf16.msra.mxu0 0
        %995 = vmatpush.bf16.msra.mxu0 0
        %996 = vmatpush.bf16.msra.mxu0 0
        %997 = vmatpush.bf16.msra.mxu0 %v985
        %998 = vmatmul.bf16.gmra.mxu0 %v988
        %v999 = vpop.f32.mrf.mxu0
        %v1000 = vadd.f32 0.0, %v999
        %v1001 = vpop.f32.mrf.mxu0
        %v1002 = vadd.f32 0.0, %v1001
        %1003 = vdwg.mxu0
        %v1006 = vunpack.c.l.b16 %v950
        %v1007 = vunpack.c.l.b16 %v951
        %v1008 = vpack.c.b16 %v1007, %v1006
        %1009 = vrot.lane.b32.xlu0 %v499, 56
        %v1010 = vpop.permute.xlu0 %1009
        %v1013 = vsel %vm557, %v1008, 0
        %1015 = vmatpush.bf16.msra.mxu0 0
        %1016 = vmatpush.bf16.msra.mxu0 0
        %1017 = vmatpush.bf16.msra.mxu0 0
        %1018 = vmatpush.bf16.msra.mxu0 0
        %1019 = vmatpush.bf16.msra.mxu0 0
        %1020 = vmatpush.bf16.msra.mxu0 0
        %1021 = vmatpush.bf16.msra.mxu0 0
        %1022 = vmatpush.bf16.msra.mxu0 %v1010
        %1023 = vmatmul.bf16.gmra.mxu0 %v1013
        %v1024 = vpop.f32.mrf.mxu0
        %v1025 = vadd.f32 0.0, %v1024
        %v1026 = vpop.f32.mrf.mxu0
        %v1027 = vadd.f32 0.0, %v1026
        %1028 = vdwg.mxu0
        %v1031 = vunpack.c.l.b16 %v952
        %v1032 = vunpack.c.l.b16 %v953
        %v1033 = vpack.c.b16 %v1032, %v1031
        %1034 = vrot.lane.b32.xlu0 %v526, 56
        %v1035 = vpop.permute.xlu0 %1034
        %v1038 = vsel %vm557, %v1033, 0
        %1040 = vmatpush.bf16.msra.mxu0 0
        %1041 = vmatpush.bf16.msra.mxu0 0
        %1042 = vmatpush.bf16.msra.mxu0 0
        %1043 = vmatpush.bf16.msra.mxu0 0
        %1044 = vmatpush.bf16.msra.mxu0 0
        %1045 = vmatpush.bf16.msra.mxu0 0
        %1046 = vmatpush.bf16.msra.mxu0 0
        %1047 = vmatpush.bf16.msra.mxu0 %v1035
        %1048 = vmatmul.bf16.gmra.mxu0 %v1038
        %v1049 = vpop.f32.mrf.mxu0
        %v1050 = vadd.f32 0.0, %v1049
        %v1051 = vpop.f32.mrf.mxu0
        %v1052 = vadd.f32 0.0, %v1051
        %1053 = vdwg.mxu0
        %1054 = vrot.lane.b32.xlu0 %v444, 112
        %v1055 = vpop.permute.xlu0 %1054
        %1056 = vrot.lane.b32.xlu0 %v444, 80
        %v1057 = vpop.permute.xlu0 %1056
        %v1059 = vsel %vm447, %v1055, 0
        %v1062 = vsel %vm447, %v1057, 0
        %1064 = vmatpush.bf16.xpose.msra.mxu0 0
        %1065 = vmatpush.bf16.xpose.msra.mxu0 0
        %1066 = vmatpush.bf16.xpose.msra.mxu0 0
        %1067 = vmatpush.bf16.xpose.msra.mxu0 0
        %1068 = vmatpush.bf16.xpose.msra.mxu0 0
        %1069 = vmatpush.bf16.xpose.msra.mxu0 0
        %1070 = vmatpush.bf16.xpose.msra.mxu0 0
        %1071 = vmatpush.bf16.xpose.msra.mxu0 %v1062
        %1072 = vmatmul.bf16.gmra.mxu0 %v1059
        %v1073 = vpop.f32.mrf.mxu0
        %v1074 = vadd.f32 0.0, %v1073
        %v1075 = vpop.f32.mrf.mxu0
        %v1076 = vadd.f32 0.0, %v1075
        %1077 = vdwg.mxu0
        %1078 = vrot.lane.b32.xlu0 %v472, 112
        %v1079 = vpop.permute.xlu0 %1078
        %1080 = vrot.lane.b32.xlu0 %v472, 80
        %v1081 = vpop.permute.xlu0 %1080
        %v1083 = vsel %vm447, %v1079, 0
        %v1086 = vsel %vm447, %v1081, 0
        %1088 = vmatpush.bf16.xpose.msra.mxu0 0
        %1089 = vmatpush.bf16.xpose.msra.mxu0 0
        %1090 = vmatpush.bf16.xpose.msra.mxu0 0
        %1091 = vmatpush.bf16.xpose.msra.mxu0 0
        %1092 = vmatpush.bf16.xpose.msra.mxu0 0
        %1093 = vmatpush.bf16.xpose.msra.mxu0 0
        %1094 = vmatpush.bf16.xpose.msra.mxu0 0
        %1095 = vmatpush.bf16.xpose.msra.mxu0 %v1086
        %1096 = vmatmul.bf16.gmra.mxu0 %v1083
        %v1097 = vpop.f32.mrf.mxu0
        %v1098 = vadd.f32 0.0, %v1097
        %v1099 = vpop.f32.mrf.mxu0
        %v1100 = vadd.f32 0.0, %v1099
        %1101 = vdwg.mxu0
        %1102 = vrot.lane.b32.xlu0 %v499, 112
        %v1103 = vpop.permute.xlu0 %1102
        %1104 = vrot.lane.b32.xlu0 %v499, 80
        %v1105 = vpop.permute.xlu0 %1104
        %v1107 = vsel %vm447, %v1103, 0
        %v1110 = vsel %vm447, %v1105, 0
        %1112 = vmatpush.bf16.xpose.msra.mxu0 0
        %1113 = vmatpush.bf16.xpose.msra.mxu0 0
        %1114 = vmatpush.bf16.xpose.msra.mxu0 0
        %1115 = vmatpush.bf16.xpose.msra.mxu0 0
        %1116 = vmatpush.bf16.xpose.msra.mxu0 0
        %1117 = vmatpush.bf16.xpose.msra.mxu0 0
        %1118 = vmatpush.bf16.xpose.msra.mxu0 0
        %1119 = vmatpush.bf16.xpose.msra.mxu0 %v1110
        %1120 = vmatmul.bf16.gmra.mxu0 %v1107
        %v1121 = vpop.f32.mrf.mxu0
        %v1122 = vadd.f32 0.0, %v1121
        %v1123 = vpop.f32.mrf.mxu0
        %v1124 = vadd.f32 0.0, %v1123
        %1125 = vdwg.mxu0
        %1126 = vrot.lane.b32.xlu0 %v526, 112
        %v1127 = vpop.permute.xlu0 %1126
        %1128 = vrot.lane.b32.xlu0 %v526, 80
        %v1129 = vpop.permute.xlu0 %1128
        %v1131 = vsel %vm447, %v1127, 0
        %v1134 = vsel %vm447, %v1129, 0
        %1136 = vmatpush.bf16.xpose.msra.mxu0 0
        %1137 = vmatpush.bf16.xpose.msra.mxu0 0
        %1138 = vmatpush.bf16.xpose.msra.mxu0 0
        %1139 = vmatpush.bf16.xpose.msra.mxu0 0
        %1140 = vmatpush.bf16.xpose.msra.mxu0 0
        %1141 = vmatpush.bf16.xpose.msra.mxu0 0
        %1142 = vmatpush.bf16.xpose.msra.mxu0 0
        %1143 = vmatpush.bf16.xpose.msra.mxu0 %v1134
        %1144 = vmatmul.bf16.gmra.mxu0 %v1131
        %v1145 = vpop.f32.mrf.mxu0
        %v1146 = vadd.f32 0.0, %v1145
        %v1147 = vpop.f32.mrf.mxu0
        %v1148 = vadd.f32 0.0, %v1147
        %1149 = vdwg.mxu0
        %v1150 = vadd.f32 %v1074, %v424
        %v1151 = vadd.f32 %v1076, %v425
        %v1152 = vadd.f32 %v1098, %v426
        %v1153 = vadd.f32 %v1100, %v427
        %v1154 = vadd.f32 %v1122, %v428
        %v1155 = vadd.f32 %v1124, %v429
        %v1156 = vadd.f32 %v1146, %v430
        %v1157 = vadd.f32 %v1148, %v431
        %v1158 = vsel %vm557, %v1150, -inf
        %1159 = vmax.xlane.f32.xlu0 %v1158
        %v1160 = vpop.xlane.xlu0 %1159
        %v1161 = vsel %vm557, %v1151, -inf
        %1162 = vmax.xlane.f32.xlu0 %v1161
        %v1163 = vpop.xlane.xlu0 %1162
        %v1164 = vsel %vm557, %v1152, -inf
        %1165 = vmax.xlane.f32.xlu0 %v1164
        %v1166 = vpop.xlane.xlu0 %1165
        %v1167 = vsel %vm557, %v1153, -inf
        %1168 = vmax.xlane.f32.xlu0 %v1167
        %v1169 = vpop.xlane.xlu0 %1168
        %v1170 = vsel %vm557, %v1154, -inf
        %1171 = vmax.xlane.f32.xlu0 %v1170
        %v1172 = vpop.xlane.xlu0 %1171
        %v1173 = vsel %vm557, %v1155, -inf
        %1174 = vmax.xlane.f32.xlu0 %v1173
        %v1175 = vpop.xlane.xlu0 %1174
        %v1176 = vsel %vm557, %v1156, -inf
        %1177 = vmax.xlane.f32.xlu0 %v1176
        %v1178 = vpop.xlane.xlu0 %1177
        %v1179 = vsel %vm557, %v1157, -inf
        %1180 = vmax.xlane.f32.xlu0 %v1179
        %v1181 = vpop.xlane.xlu0 %1180
        %v1182 = vsub.f32 %v1150, %v1160
        %v1183 = vsub.f32 %v1151, %v1163
        %v1184 = vsub.f32 %v1152, %v1166
        %v1185 = vsub.f32 %v1153, %v1169
        %v1186 = vsub.f32 %v1154, %v1172
        %v1187 = vsub.f32 %v1155, %v1175
        %v1188 = vsub.f32 %v1156, %v1178
        %v1189 = vsub.f32 %v1157, %v1181
        %v1190 = vmul.f32 %v1182, 1.442695
        %v1191 = vpow.pop %v1190
        %v1192 = vmul.f32 %v1183, 1.442695
        %v1193 = vpow.pop %v1192
        %v1194 = vmul.f32 %v1184, 1.442695
        %v1195 = vpow.pop %v1194
        %v1196 = vmul.f32 %v1185, 1.442695
        %v1197 = vpow.pop %v1196
        %v1198 = vmul.f32 %v1186, 1.442695
        %v1199 = vpow.pop %v1198
        %v1200 = vmul.f32 %v1187, 1.442695
        %v1201 = vpow.pop %v1200
        %v1202 = vmul.f32 %v1188, 1.442695
        %v1203 = vpow.pop %v1202
        %v1204 = vmul.f32 %v1189, 1.442695
        %v1205 = vpow.pop %v1204
        %v1206 = vsel %vm557, %v1191, 0.0
        %1207 = vadd.xlane.f32.xlu0 %v1206
        %v1208 = vpop.xlane.xlu0 %1207
        %v1209 = vsel %vm557, %v1193, 0.0
        %1210 = vadd.xlane.f32.xlu0 %v1209
        %v1211 = vpop.xlane.xlu0 %1210
        %v1212 = vsel %vm557, %v1195, 0.0
        %1213 = vadd.xlane.f32.xlu0 %v1212
        %v1214 = vpop.xlane.xlu0 %1213
        %v1215 = vsel %vm557, %v1197, 0.0
        %1216 = vadd.xlane.f32.xlu0 %v1215
        %v1217 = vpop.xlane.xlu0 %1216
        %v1218 = vsel %vm557, %v1199, 0.0
        %1219 = vadd.xlane.f32.xlu0 %v1218
        %v1220 = vpop.xlane.xlu0 %1219
        %v1221 = vsel %vm557, %v1201, 0.0
        %1222 = vadd.xlane.f32.xlu0 %v1221
        %v1223 = vpop.xlane.xlu0 %1222
        %v1224 = vsel %vm557, %v1203, 0.0
        %1225 = vadd.xlane.f32.xlu0 %v1224
        %v1226 = vpop.xlane.xlu0 %1225
        %v1227 = vsel %vm557, %v1205, 0.0
        %1228 = vadd.xlane.f32.xlu0 %v1227
        %v1229 = vpop.xlane.xlu0 %1228
        %v1230 = vrcp.pop %v1208
        %v1231 = vrcp.pop %v1211
        %v1232 = vrcp.pop %v1214
        %v1233 = vrcp.pop %v1217
        %v1234 = vrcp.pop %v1220
        %v1235 = vrcp.pop %v1223
        %v1236 = vrcp.pop %v1226
        %v1237 = vrcp.pop %v1229
        %v1238 = vmul.f32 %v1191, %v1230
        %v1239 = vmul.f32 %v1193, %v1231
        %v1240 = vmul.f32 %v1195, %v1232
        %v1241 = vmul.f32 %v1197, %v1233
        %v1242 = vmul.f32 %v1199, %v1234
        %v1243 = vmul.f32 %v1201, %v1235
        %v1244 = vmul.f32 %v1203, %v1236
        %v1245 = vmul.f32 %v1205, %v1237
        %v1246 = vpack.c.bf16 %v1238, %v1238
        %v1247 = vpack.c.bf16 %v1239, %v1239
        %v1248 = vpack.c.bf16 %v1240, %v1240
        %v1249 = vpack.c.bf16 %v1241, %v1241
        %v1250 = vpack.c.bf16 %v1242, %v1242
        %v1251 = vpack.c.bf16 %v1243, %v1243
        %v1252 = vpack.c.bf16 %v1244, %v1244
        %v1253 = vpack.c.bf16 %v1245, %v1245
        %v1256 = vunpack.c.l.b16 %v1246
        %v1257 = vunpack.c.l.b16 %v1247
        %v1258 = vpack.c.b16 %v1257, %v1256
        %1259 = vrot.lane.b32.xlu0 %v444, 48
        %v1260 = vpop.permute.xlu0 %1259
        %v1263 = vsel %vm557, %v1258, 0
        %1265 = vmatpush.bf16.msra.mxu0 0
        %1266 = vmatpush.bf16.msra.mxu0 0
        %1267 = vmatpush.bf16.msra.mxu0 0
        %1268 = vmatpush.bf16.msra.mxu0 0
        %1269 = vmatpush.bf16.msra.mxu0 0
        %1270 = vmatpush.bf16.msra.mxu0 0
        %1271 = vmatpush.bf16.msra.mxu0 0
        %1272 = vmatpush.bf16.msra.mxu0 %v1260
        %1273 = vmatmul.bf16.gmra.mxu0 %v1263
        %v1274 = vpop.f32.mrf.mxu0
        %v1275 = vadd.f32 0.0, %v1274
        %v1276 = vpop.f32.mrf.mxu0
        %v1277 = vadd.f32 0.0, %v1276
        %1278 = vdwg.mxu0
        %v1281 = vunpack.c.l.b16 %v1248
        %v1282 = vunpack.c.l.b16 %v1249
        %v1283 = vpack.c.b16 %v1282, %v1281
        %1284 = vrot.lane.b32.xlu0 %v472, 48
        %v1285 = vpop.permute.xlu0 %1284
        %v1288 = vsel %vm557, %v1283, 0
        %1290 = vmatpush.bf16.msra.mxu0 0
        %1291 = vmatpush.bf16.msra.mxu0 0
        %1292 = vmatpush.bf16.msra.mxu0 0
        %1293 = vmatpush.bf16.msra.mxu0 0
        %1294 = vmatpush.bf16.msra.mxu0 0
        %1295 = vmatpush.bf16.msra.mxu0 0
        %1296 = vmatpush.bf16.msra.mxu0 0
        %1297 = vmatpush.bf16.msra.mxu0 %v1285
        %1298 = vmatmul.bf16.gmra.mxu0 %v1288
        %v1299 = vpop.f32.mrf.mxu0
        %v1300 = vadd.f32 0.0, %v1299
        %v1301 = vpop.f32.mrf.mxu0
        %v1302 = vadd.f32 0.0, %v1301
        %1303 = vdwg.mxu0
        %v1306 = vunpack.c.l.b16 %v1250
        %v1307 = vunpack.c.l.b16 %v1251
        %v1308 = vpack.c.b16 %v1307, %v1306
        %1309 = vrot.lane.b32.xlu0 %v499, 48
        %v1310 = vpop.permute.xlu0 %1309
        %v1313 = vsel %vm557, %v1308, 0
        %1315 = vmatpush.bf16.msra.mxu0 0
        %1316 = vmatpush.bf16.msra.mxu0 0
        %1317 = vmatpush.bf16.msra.mxu0 0
        %1318 = vmatpush.bf16.msra.mxu0 0
        %1319 = vmatpush.bf16.msra.mxu0 0
        %1320 = vmatpush.bf16.msra.mxu0 0
        %1321 = vmatpush.bf16.msra.mxu0 0
        %1322 = vmatpush.bf16.msra.mxu0 %v1310
        %1323 = vmatmul.bf16.gmra.mxu0 %v1313
        %v1324 = vpop.f32.mrf.mxu0
        %v1325 = vadd.f32 0.0, %v1324
        %v1326 = vpop.f32.mrf.mxu0
        %v1327 = vadd.f32 0.0, %v1326
        %1328 = vdwg.mxu0
        %v1331 = vunpack.c.l.b16 %v1252
        %v1332 = vunpack.c.l.b16 %v1253
        %v1333 = vpack.c.b16 %v1332, %v1331
        %1334 = vrot.lane.b32.xlu0 %v526, 48
        %v1335 = vpop.permute.xlu0 %1334
        %v1338 = vsel %vm557, %v1333, 0
        %1340 = vmatpush.bf16.msra.mxu0 0
        %1341 = vmatpush.bf16.msra.mxu0 0
        %1342 = vmatpush.bf16.msra.mxu0 0
        %1343 = vmatpush.bf16.msra.mxu0 0
        %1344 = vmatpush.bf16.msra.mxu0 0
        %1345 = vmatpush.bf16.msra.mxu0 0
        %1346 = vmatpush.bf16.msra.mxu0 0
        %1347 = vmatpush.bf16.msra.mxu0 %v1335
        %1348 = vmatmul.bf16.gmra.mxu0 %v1338
        %v1349 = vpop.f32.mrf.mxu0
        %v1350 = vadd.f32 0.0, %v1349
        %v1351 = vpop.f32.mrf.mxu0
        %v1352 = vadd.f32 0.0, %v1351
        %1353 = vdwg.mxu0
        %1354 = vrot.lane.b32.xlu0 %v444, 104
        %v1355 = vpop.permute.xlu0 %1354
        %1356 = vrot.lane.b32.xlu0 %v444, 72
        %v1357 = vpop.permute.xlu0 %1356
        %v1359 = vsel %vm447, %v1355, 0
        %v1362 = vsel %vm447, %v1357, 0
        %1364 = vmatpush.bf16.xpose.msra.mxu0 0
        %1365 = vmatpush.bf16.xpose.msra.mxu0 0
        %1366 = vmatpush.bf16.xpose.msra.mxu0 0
        %1367 = vmatpush.bf16.xpose.msra.mxu0 0
        %1368 = vmatpush.bf16.xpose.msra.mxu0 0
        %1369 = vmatpush.bf16.xpose.msra.mxu0 0
        %1370 = vmatpush.bf16.xpose.msra.mxu0 0
        %1371 = vmatpush.bf16.xpose.msra.mxu0 %v1362
        %1372 = vmatmul.bf16.gmra.mxu0 %v1359
        %v1373 = vpop.f32.mrf.mxu0
        %v1374 = vadd.f32 0.0, %v1373
        %v1375 = vpop.f32.mrf.mxu0
        %v1376 = vadd.f32 0.0, %v1375
        %1377 = vdwg.mxu0
        %1378 = vrot.lane.b32.xlu0 %v472, 104
        %v1379 = vpop.permute.xlu0 %1378
        %1380 = vrot.lane.b32.xlu0 %v472, 72
        %v1381 = vpop.permute.xlu0 %1380
        %v1383 = vsel %vm447, %v1379, 0
        %v1386 = vsel %vm447, %v1381, 0
        %1388 = vmatpush.bf16.xpose.msra.mxu0 0
        %1389 = vmatpush.bf16.xpose.msra.mxu0 0
        %1390 = vmatpush.bf16.xpose.msra.mxu0 0
        %1391 = vmatpush.bf16.xpose.msra.mxu0 0
        %1392 = vmatpush.bf16.xpose.msra.mxu0 0
        %1393 = vmatpush.bf16.xpose.msra.mxu0 0
        %1394 = vmatpush.bf16.xpose.msra.mxu0 0
        %1395 = vmatpush.bf16.xpose.msra.mxu0 %v1386
        %1396 = vmatmul.bf16.gmra.mxu0 %v1383
        %v1397 = vpop.f32.mrf.mxu0
        %v1398 = vadd.f32 0.0, %v1397
        %v1399 = vpop.f32.mrf.mxu0
        %v1400 = vadd.f32 0.0, %v1399
        %1401 = vdwg.mxu0
        %1402 = vrot.lane.b32.xlu0 %v499, 104
        %v1403 = vpop.permute.xlu0 %1402
        %1404 = vrot.lane.b32.xlu0 %v499, 72
        %v1405 = vpop.permute.xlu0 %1404
        %v1407 = vsel %vm447, %v1403, 0
        %v1410 = vsel %vm447, %v1405, 0
        %1412 = vmatpush.bf16.xpose.msra.mxu0 0
        %1413 = vmatpush.bf16.xpose.msra.mxu0 0
        %1414 = vmatpush.bf16.xpose.msra.mxu0 0
        %1415 = vmatpush.bf16.xpose.msra.mxu0 0
        %1416 = vmatpush.bf16.xpose.msra.mxu0 0
        %1417 = vmatpush.bf16.xpose.msra.mxu0 0
        %1418 = vmatpush.bf16.xpose.msra.mxu0 0
        %1419 = vmatpush.bf16.xpose.msra.mxu0 %v1410
        %1420 = vmatmul.bf16.gmra.mxu0 %v1407
        %v1421 = vpop.f32.mrf.mxu0
        %v1422 = vadd.f32 0.0, %v1421
        %v1423 = vpop.f32.mrf.mxu0
        %v1424 = vadd.f32 0.0, %v1423
        %1425 = vdwg.mxu0
        %1426 = vrot.lane.b32.xlu0 %v526, 104
        %v1427 = vpop.permute.xlu0 %1426
        %1428 = vrot.lane.b32.xlu0 %v526, 72
        %v1429 = vpop.permute.xlu0 %1428
        %v1431 = vsel %vm447, %v1427, 0
        %v1434 = vsel %vm447, %v1429, 0
        %1436 = vmatpush.bf16.xpose.msra.mxu0 0
        %1437 = vmatpush.bf16.xpose.msra.mxu0 0
        %1438 = vmatpush.bf16.xpose.msra.mxu0 0
        %1439 = vmatpush.bf16.xpose.msra.mxu0 0
        %1440 = vmatpush.bf16.xpose.msra.mxu0 0
        %1441 = vmatpush.bf16.xpose.msra.mxu0 0
        %1442 = vmatpush.bf16.xpose.msra.mxu0 0
        %1443 = vmatpush.bf16.xpose.msra.mxu0 %v1434
        %1444 = vmatmul.bf16.gmra.mxu0 %v1431
        %v1445 = vpop.f32.mrf.mxu0
        %v1446 = vadd.f32 0.0, %v1445
        %v1447 = vpop.f32.mrf.mxu0
        %v1448 = vadd.f32 0.0, %v1447
        %1449 = vdwg.mxu0
        %v1450 = vadd.f32 %v1374, %v432
        %v1451 = vadd.f32 %v1376, %v433
        %v1452 = vadd.f32 %v1398, %v434
        %v1453 = vadd.f32 %v1400, %v435
        %v1454 = vadd.f32 %v1422, %v436
        %v1455 = vadd.f32 %v1424, %v437
        %v1456 = vadd.f32 %v1446, %v438
        %v1457 = vadd.f32 %v1448, %v439
        %v1458 = vsel %vm557, %v1450, -inf
        %1459 = vmax.xlane.f32.xlu0 %v1458
        %v1460 = vpop.xlane.xlu0 %1459
        %v1461 = vsel %vm557, %v1451, -inf
        %1462 = vmax.xlane.f32.xlu0 %v1461
        %v1463 = vpop.xlane.xlu0 %1462
        %v1464 = vsel %vm557, %v1452, -inf
        %1465 = vmax.xlane.f32.xlu0 %v1464
        %v1466 = vpop.xlane.xlu0 %1465
        %v1467 = vsel %vm557, %v1453, -inf
        %1468 = vmax.xlane.f32.xlu0 %v1467
        %v1469 = vpop.xlane.xlu0 %1468
        %v1470 = vsel %vm557, %v1454, -inf
        %1471 = vmax.xlane.f32.xlu0 %v1470
        %v1472 = vpop.xlane.xlu0 %1471
        %v1473 = vsel %vm557, %v1455, -inf
        %1474 = vmax.xlane.f32.xlu0 %v1473
        %v1475 = vpop.xlane.xlu0 %1474
        %v1476 = vsel %vm557, %v1456, -inf
        %1477 = vmax.xlane.f32.xlu0 %v1476
        %v1478 = vpop.xlane.xlu0 %1477
        %v1479 = vsel %vm557, %v1457, -inf
        %1480 = vmax.xlane.f32.xlu0 %v1479
        %v1481 = vpop.xlane.xlu0 %1480
        %v1482 = vsub.f32 %v1450, %v1460
        %v1483 = vsub.f32 %v1451, %v1463
        %v1484 = vsub.f32 %v1452, %v1466
        %v1485 = vsub.f32 %v1453, %v1469
        %v1486 = vsub.f32 %v1454, %v1472
        %v1487 = vsub.f32 %v1455, %v1475
        %v1488 = vsub.f32 %v1456, %v1478
        %v1489 = vsub.f32 %v1457, %v1481
        %v1490 = vmul.f32 %v1482, 1.442695
        %v1491 = vpow.pop %v1490
        %v1492 = vmul.f32 %v1483, 1.442695
        %v1493 = vpow.pop %v1492
        %v1494 = vmul.f32 %v1484, 1.442695
        %v1495 = vpow.pop %v1494
        %v1496 = vmul.f32 %v1485, 1.442695
        %v1497 = vpow.pop %v1496
        %v1498 = vmul.f32 %v1486, 1.442695
        %v1499 = vpow.pop %v1498
        %v1500 = vmul.f32 %v1487, 1.442695
        %v1501 = vpow.pop %v1500
        %v1502 = vmul.f32 %v1488, 1.442695
        %v1503 = vpow.pop %v1502
        %v1504 = vmul.f32 %v1489, 1.442695
        %v1505 = vpow.pop %v1504
        %v1506 = vsel %vm557, %v1491, 0.0
        %1507 = vadd.xlane.f32.xlu0 %v1506
        %v1508 = vpop.xlane.xlu0 %1507
        %v1509 = vsel %vm557, %v1493, 0.0
        %1510 = vadd.xlane.f32.xlu0 %v1509
        %v1511 = vpop.xlane.xlu0 %1510
        %v1512 = vsel %vm557, %v1495, 0.0
        %1513 = vadd.xlane.f32.xlu0 %v1512
        %v1514 = vpop.xlane.xlu0 %1513
        %v1515 = vsel %vm557, %v1497, 0.0
        %1516 = vadd.xlane.f32.xlu0 %v1515
        %v1517 = vpop.xlane.xlu0 %1516
        %v1518 = vsel %vm557, %v1499, 0.0
        %1519 = vadd.xlane.f32.xlu0 %v1518
        %v1520 = vpop.xlane.xlu0 %1519
        %v1521 = vsel %vm557, %v1501, 0.0
        %1522 = vadd.xlane.f32.xlu0 %v1521
        %v1523 = vpop.xlane.xlu0 %1522
        %v1524 = vsel %vm557, %v1503, 0.0
        %1525 = vadd.xlane.f32.xlu0 %v1524
        %v1526 = vpop.xlane.xlu0 %1525
        %v1527 = vsel %vm557, %v1505, 0.0
        %1528 = vadd.xlane.f32.xlu0 %v1527
        %v1529 = vpop.xlane.xlu0 %1528
        %v1530 = vrcp.pop %v1508
        %v1531 = vrcp.pop %v1511
        %v1532 = vrcp.pop %v1514
        %v1533 = vrcp.pop %v1517
        %v1534 = vrcp.pop %v1520
        %v1535 = vrcp.pop %v1523
        %v1536 = vrcp.pop %v1526
        %v1537 = vrcp.pop %v1529
        %v1538 = vmul.f32 %v1491, %v1530
        %v1539 = vmul.f32 %v1493, %v1531
        %v1540 = vmul.f32 %v1495, %v1532
        %v1541 = vmul.f32 %v1497, %v1533
        %v1542 = vmul.f32 %v1499, %v1534
        %v1543 = vmul.f32 %v1501, %v1535
        %v1544 = vmul.f32 %v1503, %v1536
        %v1545 = vmul.f32 %v1505, %v1537
        %v1546 = vpack.c.bf16 %v1538, %v1538
        %v1547 = vpack.c.bf16 %v1539, %v1539
        %v1548 = vpack.c.bf16 %v1540, %v1540
        %v1549 = vpack.c.bf16 %v1541, %v1541
        %v1550 = vpack.c.bf16 %v1542, %v1542
        %v1551 = vpack.c.bf16 %v1543, %v1543
        %v1552 = vpack.c.bf16 %v1544, %v1544
        %v1553 = vpack.c.bf16 %v1545, %v1545
        %v1556 = vunpack.c.l.b16 %v1546
        %v1557 = vunpack.c.l.b16 %v1547
        %v1558 = vpack.c.b16 %v1557, %v1556
        %1559 = vrot.lane.b32.xlu0 %v444, 40
        %v1560 = vpop.permute.xlu0 %1559
        %v1563 = vsel %vm557, %v1558, 0
        %1565 = vmatpush.bf16.msra.mxu0 0
        %1566 = vmatpush.bf16.msra.mxu0 0
        %1567 = vmatpush.bf16.msra.mxu0 0
        %1568 = vmatpush.bf16.msra.mxu0 0
        %1569 = vmatpush.bf16.msra.mxu0 0
        %1570 = vmatpush.bf16.msra.mxu0 0
        %1571 = vmatpush.bf16.msra.mxu0 0
        %1572 = vmatpush.bf16.msra.mxu0 %v1560
        %1573 = vmatmul.bf16.gmra.mxu0 %v1563
        %v1574 = vpop.f32.mrf.mxu0
        %v1575 = vadd.f32 0.0, %v1574
        %v1576 = vpop.f32.mrf.mxu0
        %v1577 = vadd.f32 0.0, %v1576
        %1578 = vdwg.mxu0
        %v1581 = vunpack.c.l.b16 %v1548
        %v1582 = vunpack.c.l.b16 %v1549
        %v1583 = vpack.c.b16 %v1582, %v1581
        %1584 = vrot.lane.b32.xlu0 %v472, 40
        %v1585 = vpop.permute.xlu0 %1584
        %v1588 = vsel %vm557, %v1583, 0
        %1590 = vmatpush.bf16.msra.mxu0 0
        %1591 = vmatpush.bf16.msra.mxu0 0
        %1592 = vmatpush.bf16.msra.mxu0 0
        %1593 = vmatpush.bf16.msra.mxu0 0
        %1594 = vmatpush.bf16.msra.mxu0 0
        %1595 = vmatpush.bf16.msra.mxu0 0
        %1596 = vmatpush.bf16.msra.mxu0 0
        %1597 = vmatpush.bf16.msra.mxu0 %v1585
        %1598 = vmatmul.bf16.gmra.mxu0 %v1588
        %v1599 = vpop.f32.mrf.mxu0
        %v1600 = vadd.f32 0.0, %v1599
        %v1601 = vpop.f32.mrf.mxu0
        %v1602 = vadd.f32 0.0, %v1601
        %1603 = vdwg.mxu0
        %v1606 = vunpack.c.l.b16 %v1550
        %v1607 = vunpack.c.l.b16 %v1551
        %v1608 = vpack.c.b16 %v1607, %v1606
        %1609 = vrot.lane.b32.xlu0 %v499, 40
        %v1610 = vpop.permute.xlu0 %1609
        %v1613 = vsel %vm557, %v1608, 0
        %1615 = vmatpush.bf16.msra.mxu0 0
        %1616 = vmatpush.bf16.msra.mxu0 0
        %1617 = vmatpush.bf16.msra.mxu0 0
        %1618 = vmatpush.bf16.msra.mxu0 0
        %1619 = vmatpush.bf16.msra.mxu0 0
        %1620 = vmatpush.bf16.msra.mxu0 0
        %1621 = vmatpush.bf16.msra.mxu0 0
        %1622 = vmatpush.bf16.msra.mxu0 %v1610
        %1623 = vmatmul.bf16.gmra.mxu0 %v1613
        %v1624 = vpop.f32.mrf.mxu0
        %v1625 = vadd.f32 0.0, %v1624
        %v1626 = vpop.f32.mrf.mxu0
        %v1627 = vadd.f32 0.0, %v1626
        %1628 = vdwg.mxu0
        %v1631 = vunpack.c.l.b16 %v1552
        %v1632 = vunpack.c.l.b16 %v1553
        %v1633 = vpack.c.b16 %v1632, %v1631
        %1634 = vrot.lane.b32.xlu0 %v526, 40
        %v1635 = vpop.permute.xlu0 %1634
        %v1638 = vsel %vm557, %v1633, 0
        %1640 = vmatpush.bf16.msra.mxu0 0
        %1641 = vmatpush.bf16.msra.mxu0 0
        %1642 = vmatpush.bf16.msra.mxu0 0
        %1643 = vmatpush.bf16.msra.mxu0 0
        %1644 = vmatpush.bf16.msra.mxu0 0
        %1645 = vmatpush.bf16.msra.mxu0 0
        %1646 = vmatpush.bf16.msra.mxu0 0
        %1647 = vmatpush.bf16.msra.mxu0 %v1635
        %1648 = vmatmul.bf16.gmra.mxu0 %v1638
        %v1649 = vpop.f32.mrf.mxu0
        %v1650 = vadd.f32 0.0, %v1649
        %v1651 = vpop.f32.mrf.mxu0
        %v1652 = vadd.f32 0.0, %v1651
        %1653 = vdwg.mxu0
        %1662 = vrot.lane.b32.xlu0 %v975, 8
        %v1663 = vpop.permute.xlu0 %1662
        %1664 = vrot.lane.b32.xlu0 %v977, 8
        %v1665 = vpop.permute.xlu0 %1664
        %1666 = vrot.lane.b32.xlu0 %v1000, 8
        %v1667 = vpop.permute.xlu0 %1666
        %1668 = vrot.lane.b32.xlu0 %v1002, 8
        %v1669 = vpop.permute.xlu0 %1668
        %1670 = vrot.lane.b32.xlu0 %v1025, 8
        %v1671 = vpop.permute.xlu0 %1670
        %1672 = vrot.lane.b32.xlu0 %v1027, 8
        %v1673 = vpop.permute.xlu0 %1672
        %1674 = vrot.lane.b32.xlu0 %v1050, 8
        %v1675 = vpop.permute.xlu0 %1674
        %1676 = vrot.lane.b32.xlu0 %v1052, 8
        %v1677 = vpop.permute.xlu0 %1676
        %1694 = vrot.lane.b32.xlu0 %v1275, 16
        %v1695 = vpop.permute.xlu0 %1694
        %1696 = vrot.lane.b32.xlu0 %v1277, 16
        %v1697 = vpop.permute.xlu0 %1696
        %1698 = vrot.lane.b32.xlu0 %v1300, 16
        %v1699 = vpop.permute.xlu0 %1698
        %1700 = vrot.lane.b32.xlu0 %v1302, 16
        %v1701 = vpop.permute.xlu0 %1700
        %1702 = vrot.lane.b32.xlu0 %v1325, 16
        %v1703 = vpop.permute.xlu0 %1702
        %1704 = vrot.lane.b32.xlu0 %v1327, 16
        %v1705 = vpop.permute.xlu0 %1704
        %1706 = vrot.lane.b32.xlu0 %v1350, 16
        %v1707 = vpop.permute.xlu0 %1706
        %1708 = vrot.lane.b32.xlu0 %v1352, 16
        %v1709 = vpop.permute.xlu0 %1708
        %1726 = vrot.lane.b32.xlu0 %v1575, 24
        %v1727 = vpop.permute.xlu0 %1726
        %1728 = vrot.lane.b32.xlu0 %v1577, 24
        %v1729 = vpop.permute.xlu0 %1728
        %1730 = vrot.lane.b32.xlu0 %v1600, 24
        %v1731 = vpop.permute.xlu0 %1730
        %1732 = vrot.lane.b32.xlu0 %v1602, 24
        %v1733 = vpop.permute.xlu0 %1732
        %1734 = vrot.lane.b32.xlu0 %v1625, 24
        %v1735 = vpop.permute.xlu0 %1734
        %1736 = vrot.lane.b32.xlu0 %v1627, 24
        %v1737 = vpop.permute.xlu0 %1736
        %1738 = vrot.lane.b32.xlu0 %v1650, 24
        %v1739 = vpop.permute.xlu0 %1738
        %1740 = vrot.lane.b32.xlu0 %v1652, 24
        %v1741 = vpop.permute.xlu0 %1740
        %v1750 = vsel %vm447, %v675, %v1663
        %v1751 = vsel %vm447, %v677, %v1665
        %v1752 = vsel %vm447, %v700, %v1667
        %v1753 = vsel %vm447, %v702, %v1669
        %v1754 = vsel %vm447, %v725, %v1671
        %v1755 = vsel %vm447, %v727, %v1673
        %v1756 = vsel %vm447, %v750, %v1675
        %v1757 = vsel %vm447, %v752, %v1677
        %v1758 = vsel %vm557, %v1750, %v1695
        %v1759 = vsel %vm557, %v1751, %v1697
        %v1760 = vsel %vm557, %v1752, %v1699
        %v1761 = vsel %vm557, %v1753, %v1701
        %v1762 = vsel %vm557, %v1754, %v1703
        %v1763 = vsel %vm557, %v1755, %v1705
        %v1764 = vsel %vm557, %v1756, %v1707
        %v1765 = vsel %vm557, %v1757, %v1709
        %vm1766 = vcmask 195584
        %v1767 = vsel %vm1766, %v1758, %v1727
        %v1768 = vsel %vm1766, %v1759, %v1729
        %v1769 = vsel %vm1766, %v1760, %v1731
        %v1770 = vsel %vm1766, %v1761, %v1733
        %v1771 = vsel %vm1766, %v1762, %v1735
        %v1772 = vsel %vm1766, %v1763, %v1737
        %v1773 = vsel %vm1766, %v1764, %v1739
        %v1774 = vsel %vm1766, %v1765, %v1741
        %v1775 = vpack.c.bf16 %v1768, %v1767
        %v1776 = vpack.c.bf16 %v1770, %v1769
        %v1777 = vpack.c.bf16 %v1772, %v1771
        %v1778 = vpack.c.bf16 %v1774, %v1773
        %v1779 = vld [vmem:[#allocation8] sm:$0xf]
        %v1780 = vld [vmem:[#allocation8 + $0x4] sm:$0xf]
        %v1781 = vld [vmem:[#allocation8 + $0x8] sm:$0xf]
        %v1782 = vld [vmem:[#allocation8 + $0xc] sm:$0xf]
        %v1783 = vld [vmem:[%s5] sm:$0x1]
        %v1785 = vperm.slane %v1783, 0
        %v1791 = vunpack.c.l.b16 %v1779
        %v1792 = vunpack.c.l.b16 %v1780
        %v1793 = vunpack.c.l.b16 %v1781
        %v1794 = vunpack.c.l.b16 %v1782
        %v1795 = vpack.c.b16 %v1792, %v1791
        %v1796 = vpack.c.b16 %v1794, %v1793
        %v1800 = vsel %vm358, %v1775, 0
        %v1803 = vsel %vm358, %v1776, 0
        %v1806 = vsel %vm358, %v1777, 0
        %v1809 = vsel %vm358, %v1778, 0
        %1811 = vmatpush.bf16.msra.mxu0 0
        %1812 = vmatpush.bf16.msra.mxu0 0
        %1813 = vmatpush.bf16.msra.mxu0 0
        %1814 = vmatpush.bf16.msra.mxu0 0
        %1815 = vmatpush.bf16.msra.mxu0 0
        %1816 = vmatpush.bf16.msra.mxu0 0
        %1817 = vmatpush.bf16.msra.mxu0 %v1796
        %1818 = vmatpush.bf16.msra.mxu0 %v1795
        %1819 = vmatmul.bf16.gmra.mxu0 %v1800
        %v1820 = vpop.f32.mrf.mxu0
        %v1821 = vadd.f32 %v1785, %v1820
        %v1822 = vpop.f32.mrf.mxu0
        %v1823 = vadd.f32 %v1785, %v1822
        %1824 = vmatmul.bf16.gmra.mxu0 %v1803
        %v1825 = vpop.f32.mrf.mxu0
        %v1826 = vadd.f32 %v1785, %v1825
        %v1827 = vpop.f32.mrf.mxu0
        %v1828 = vadd.f32 %v1785, %v1827
        %1829 = vmatmul.bf16.gmra.mxu0 %v1806
        %v1830 = vpop.f32.mrf.mxu0
        %v1831 = vadd.f32 %v1785, %v1830
        %v1832 = vpop.f32.mrf.mxu0
        %v1833 = vadd.f32 %v1785, %v1832
        %1834 = vmatmul.bf16.gmra.mxu0 %v1809
        %v1835 = vpop.f32.mrf.mxu0
        %v1836 = vadd.f32 %v1785, %v1835
        %v1837 = vpop.f32.mrf.mxu0
        %v1838 = vadd.f32 %v1785, %v1837
        %1839 = vdwg.mxu0
        %1840 = vst.msk [vmem:[%s322] sm:$0xff] %vm358, %v1821
        %1841 = vst.msk [vmem:[%s322 + $0x8] sm:$0xff] %vm358, %v1823
        %1842 = vst.msk [vmem:[%s322 + $0x10] sm:$0xff] %vm358, %v1826
        %1843 = vst.msk [vmem:[%s322 + $0x18] sm:$0xff] %vm358, %v1828
        %1844 = vst.msk [vmem:[%s322 + $0x20] sm:$0xff] %vm358, %v1831
        %1845 = vst.msk [vmem:[%s322 + $0x28] sm:$0xff] %vm358, %v1833
        %1846 = vst.msk [vmem:[%s322 + $0x30] sm:$0xff] %vm358, %v1836
        %1847 = vst.msk [vmem:[%s322 + $0x38] sm:$0xff] %vm358, %v1838
        %s1848 = sand.u32 %s164, 1
        %s1849 = scalar_lea.sflag [#allocation4], %s1848
        %s1850 = sand.u32 %s164, 1
        %s1851 = smul.addr %s1850, 64
        %s1852 = scalar_lea.vmem [#allocation10], %s1851
        // Predicated region
        $region61: #{tpu_custom_call.1} parent=43 // pred_check
          %p1853 = pneg %p174
        $region62: #{tpu_custom_call.1} parent=43 // pred_check_branch
          %1855 = sbr.rel (%p1853) target = $region64
        $region63: #{tpu_custom_call.1} parent=43 // pred_region
          %s1856 = smul.u32 4, %s25
          %1858 = vsyncadd %s1849, 0
          %s1859 = smul.addr %s1856, 2
          %s1860 = smul.addr %s1859, 8
          %s1861 = scalar_lea.hbm %s6, %s1860
          %s1862 = sshll.u32 %s1852, 4
          %s1863 = int_to_ptr.vmem [resolvable:$true] %s1862
          %s1864 = sshll.u32 %s1861, 4
          %s1865 = int_to_ptr.hbm [resolvable:$true] %s1864
          %1870 = dma.vmem_to_hbm [thread:$0]  %s1863, 1024, %s1865, %s1849, 128, 128, 8
        $region64: #{tpu_custom_call.1} parent=43 // pred_fallthru
          _
      $region44: #{tpu_custom_call.1} parent=5 // pred_fallthru
        _
      %p1871 = scmp.le.s32.totalorder 2, %s20
      // Predicated region
      $region65: #{tpu_custom_call.1} parent=5 // pred_check
        %p1872 = pneg %p1871
      $region66: #{tpu_custom_call.1} parent=5 // pred_check_branch
        %1874 = sbr.rel (%p1872) target = $region68
      $region67: #{tpu_custom_call.1} parent=5 // pred_region
        %s1875 = ssub.s32 %s20, 2
        // Predicated region
        $region69: #{tpu_custom_call.1} parent=67 // pred_check
          %p1876 = pneg %p180
        $region70: #{tpu_custom_call.1} parent=67 // pred_check_branch
          %1878 = sbr.rel (%p1876) target = $region72
        $region71: #{tpu_custom_call.1} parent=67 // pred_region
          %s1879 = sand.u32 %s165, 1
          %s1880 = scalar_lea.sflag [#allocation4], %s1879
          %s1881 = sand.u32 %s165, 1
          %s1882 = smul.addr %s1881, 64
          %s1883 = scalar_lea.vmem [#allocation10], %s1882
          %1885 = dma.done %s1880, 1024
        $region72: #{tpu_custom_call.1} parent=67 // pred_fallthru
          _
      $region68: #{tpu_custom_call.1} parent=5 // pred_fallthru
        _
    $region6: #{tpu_custom_call.1} parent=1 // loop_footer
      %s24 = sadd.s32 1, %s20
    $region7: #{tpu_custom_call.1} parent=1 // loop_footer_branch
      %19 = sbr.rel target = $region3
    $region8: #{tpu_custom_call.1} parent=1 // loop_exit
      _
    %1886 = vsyncpa [#allocation3], 1
    %s1887 = scalar_lea.sflag [#allocation3], 1
    %1888 = vsyncpa %s1887, 1
    %1889 = vsyncpa [#allocation6], 1
    %1890 = vsyncpa [#allocation9], 1
    %1891 = vsyncpa [#allocation4], 1
    %s1892 = scalar_lea.sflag [#allocation4], 1
    %1893 = vsyncpa %s1892, 1

</llo_original>
